<compile_context>
chip_gen: v7x
topology: tpu7x:2x2x1
jax: 0.10.0
libtpu: 0.0.40
codegen_flags: <defaults>
</compile_context>

<pallas_src>
import math

import jax
import jax.numpy as jnp
from jax.experimental import pallas as pl
from jax.experimental.pallas import tpu as pltpu

# ----- synthetic small "CLIP-ViT" config (shapes implied by the module) -----
BATCH = 2
IN_CH = 3
IMG = 16
PATCH = 8
GRID_HW = IMG // PATCH
NUM_PATCHES = GRID_HW * GRID_HW      # 4
SEQ = NUM_PATCHES + 1                # 5 = CLS + patches
HIDDEN = 32
NUM_HEADS = 4
HEAD_DIM = HIDDEN // NUM_HEADS       # 8
MLP = 4 * HIDDEN                     # 128
NUM_LAYERS = 2
NUM_CLASSES = 2
PATCH_DIM = IN_CH * PATCH * PATCH    # 192
LN_EPS = 1e-5
BS = BATCH * SEQ                     # 10  — both batch elements stacked on rows
HBS = NUM_HEADS * BS                 # 40  — per-head-replicated query rows
NEG_INF = -1e9                       # additive mask for cross-batch keys


def _layernorm(x, w, b):
    mu = jnp.mean(x, axis=-1, keepdims=True)
    var = jnp.mean((x - mu) ** 2, axis=-1, keepdims=True)
    return (x - mu) * jax.lax.rsqrt(var + LN_EPS) * w + b


def _bf16_dot(a, w_bf16):
    # bf16 x bf16 MXU matmul with f32 accumulation.
    return jnp.dot(a.astype(jnp.bfloat16), w_bf16,
                   preferred_element_type=jnp.float32)


def mammo_kernel(patches_ref, w_patch_ref, emb_bias_ref, pre_w_ref, pre_b_ref,
                 tile_q_ref, untile_ref, head_mask_ref, attn_bias_ref,
                 sel_ref, clf_w_ref, clf_b_ref,
                 ln1_w_ref, ln1_b_ref, wqkv_ref, bqkv_ref, wo_ref, bo_ref,
                 ln2_w_ref, ln2_b_ref, fc1_w_ref, fc1_b_ref, fc2_w_ref, fc2_b_ref,
                 out_ref, x_scr):
    l = pl.program_id(0)

    # --- step 0: CLIP vision embeddings (patch "conv" as one matmul) +
    #     precombined CLS/positional template + pre_layrnorm ---
    @pl.when(l == 0)
    def _():
        emb = _bf16_dot(patches_ref[...], w_patch_ref[...]) + emb_bias_ref[...]
        x_scr[...] = _layernorm(emb, pre_w_ref[...], pre_b_ref[...])

    x = x_scr[...]                                              # (BS, H) f32

    # --- self-attention (pre-LN).  attention scale is pre-folded into the
    #     Q columns of wqkv/bqkv. ---
    xn = _layernorm(x, ln1_w_ref[...], ln1_b_ref[...])
    qkv = _bf16_dot(xn, wqkv_ref[...]) + bqkv_ref[...]          # (BS, 3H) f32
    q = qkv[:, :HIDDEN]
    k = qkv[:, HIDDEN:2 * HIDDEN]
    v = qkv[:, 2 * HIDDEN:]

    # Batched block-masked attention: replicate Q per head along sublanes with
    # one matmul, zero the non-head lanes, then ONE (HBS, BS) score matmul,
    # ONE masked softmax and ONE (HBS, H) context matmul for all heads+batches.
    q_t = jnp.dot(tile_q_ref[...], q.astype(jnp.bfloat16),
                  preferred_element_type=jnp.float32)           # (HBS, H)
    q_t = q_t * head_mask_ref[...]
    s = jax.lax.dot_general(q_t.astype(jnp.bfloat16), k.astype(jnp.bfloat16),
                            (((1,), (1,)), ((), ())),
                            preferred_element_type=jnp.float32)  # (HBS, BS)
    s = s + attn_bias_ref[...]                                  # mask cross-batch
    s = s - jnp.max(s, axis=-1, keepdims=True)
    e = jnp.exp(s)
    p = e * pl.reciprocal(jnp.sum(e, axis=-1, keepdims=True), approx=True)
    c = jnp.dot(p.astype(jnp.bfloat16), v.astype(jnp.bfloat16),
                preferred_element_type=jnp.float32)             # (HBS, H)
    # Fold per-head blocks back to (BS, H): ctx[r, d] = c[(d//HEAD_DIM)*BS + r, d]
    ctx = jnp.dot(untile_ref[...], (c * head_mask_ref[...]).astype(jnp.bfloat16),
                  preferred_element_type=jnp.float32)           # (BS, H)
    x = x + _bf16_dot(ctx, wo_ref[...]) + bo_ref[...]

    # --- MLP with CLIP quick_gelu ---
    xn2 = _layernorm(x, ln2_w_ref[...], ln2_b_ref[...])
    h1 = _bf16_dot(xn2, fc1_w_ref[...]) + fc1_b_ref[...]
    act = h1 * jax.nn.sigmoid(1.702 * h1)
    x = x + _bf16_dot(act, fc2_w_ref[...]) + fc2_b_ref[...]

    x_scr[...] = x

    # --- last step: gather every last_hidden_state[:, 0] with one selection
    #     matmul and run the classifier once ---
    @pl.when(l == NUM_LAYERS - 1)
    def _():
        cls_tok = jnp.dot(sel_ref[...], x.astype(jnp.bfloat16),
                          preferred_element_type=jnp.float32)   # (B, H)
        out_ref[...] = _bf16_dot(cls_tok, clf_w_ref[...]) + clf_b_ref[...]


def extract_patches(images):
    # NCHW -> (B, num_patches, C*p*p), matching Conv2d(kernel=stride=PATCH, bias=False)
    B, C, H, W = images.shape
    x = images.reshape(B, C, GRID_HW, PATCH, GRID_HW, PATCH)
    x = x.transpose(0, 2, 4, 1, 3, 5)                           # B, gh, gw, C, p, p
    return x.reshape(B, NUM_PATCHES, PATCH_DIM)


def _attention_constants():
    # tile_q[h*BS + r, r] = 1  (replicate Q rows per head along sublanes)
    eye_bs = jnp.eye(BS, dtype=jnp.float32)
    tile_q = jnp.tile(eye_bs, (NUM_HEADS, 1))                   # (HBS, BS)
    untile = tile_q.T                                           # (BS, HBS)
    # head_mask[h*BS + r, d] = 1 iff d belongs to head h's lane block
    row_head = jnp.arange(HBS) // BS
    col_head = jnp.arange(HIDDEN) // HEAD_DIM
    head_mask = (row_head[:, None] == col_head[None, :]).astype(jnp.float32)
    # additive cross-batch mask (query batch != key batch -> NEG_INF)
    batch_of = jnp.arange(BS) // SEQ
    same = batch_of[:, None] == batch_of[None, :]
    attn_bias = jnp.tile(jnp.where(same, 0.0, NEG_INF).astype(jnp.float32),
                         (NUM_HEADS, 1))                        # (HBS, BS)
    # CLS-row selector: sel[b, b*SEQ] = 1
    sel = (jnp.arange(BS)[None, :] ==
           (jnp.arange(BATCH) * SEQ)[:, None]).astype(jnp.float32)  # (B, BS)
    return tile_q, untile, head_mask, attn_bias, sel


def mammo_classification(images, params):
    # ---- host-side layout (free plumbing, keeps all sublane shuffles out of
    #      the kernel) ----
    patches = extract_patches(images).astype(jnp.float32)       # (B, NP, PD)
    patches_padded = jnp.pad(patches, ((0, 0), (1, 0), (0, 0))) \
                        .reshape(BS, PATCH_DIM)                 # zero row @ CLS
    emb_bias = params["pos"] + jnp.pad(params["cls"], ((0, SEQ - 1), (0, 0)))
    emb_bias = jnp.tile(emb_bias, (BATCH, 1))                   # (BS, H)
    tile_q, untile, head_mask, attn_bias, sel = _attention_constants()

    bf = lambda a: a.astype(jnp.bfloat16)                       # MXU operands only
    args = (patches_padded, bf(params["w_patch"]), emb_bias,
            params["pre_w"], params["pre_b"],
            bf(tile_q), bf(untile), head_mask, attn_bias,
            bf(sel), bf(params["clf_w"]), params["clf_b"],
            params["ln1_w"], params["ln1_b"],
            bf(params["w_qkv"]), params["b_qkv"],
            bf(params["w_o"]), params["b_o"],
            params["ln2_w"], params["ln2_b"],
            bf(params["fc1_w"]), params["fc1_b"],
            bf(params["fc2_w"]), params["fc2_b"])

    const2 = lambda shape: pl.BlockSpec(shape, lambda l: (0, 0))
    per_layer = lambda d1, d2: pl.BlockSpec((pl.Squeezed(), d1, d2),
                                            lambda l: (l, 0, 0))

    in_specs = [
        const2((BS, PATCH_DIM)),            # patches_padded
        const2((PATCH_DIM, HIDDEN)),        # w_patch
        const2((BS, HIDDEN)),               # emb_bias
        const2((1, HIDDEN)),                # pre_w
        const2((1, HIDDEN)),                # pre_b
        const2((HBS, BS)),                  # tile_q
        const2((BS, HBS)),                  # untile
        const2((HBS, HIDDEN)),              # head_mask
        const2((HBS, BS)),                  # attn_bias
        const2((BATCH, BS)),                # sel
        const2((HIDDEN, NUM_CLASSES)),      # clf_w
        const2((1, NUM_CLASSES)),           # clf_b
        per_layer(1, HIDDEN),               # ln1_w
        per_layer(1, HIDDEN),               # ln1_b
        per_layer(HIDDEN, 3 * HIDDEN),      # w_qkv
        per_layer(1, 3 * HIDDEN),           # b_qkv
        per_layer(HIDDEN, HIDDEN),          # w_o
        per_layer(1, HIDDEN),               # b_o
        per_layer(1, HIDDEN),               # ln2_w
        per_layer(1, HIDDEN),               # ln2_b
        per_layer(HIDDEN, MLP),             # fc1_w
        per_layer(1, MLP),                  # fc1_b
        per_layer(MLP, HIDDEN),             # fc2_w
        per_layer(1, HIDDEN),               # fc2_b
    ]

    # TODO(synk): at real CLIP-ViT-B sizes (HIDDEN=768, SEQ=257, 12 layers) raise
    # vmem_limit_bytes for the double-buffered layer weights (and on v7x's 64 MiB
    # VMEM split each layer into attention / MLP grid sub-steps), and add a
    # leading "parallel" query-row-block grid axis to use v7x's second TensorCore.
    grid_spec = pltpu.PrefetchScalarGridSpec(
        num_scalar_prefetch=0,
        grid=(NUM_LAYERS,),
        in_specs=in_specs,
        out_specs=pl.BlockSpec((BATCH, NUM_CLASSES), lambda l: (0, 0)),
        scratch_shapes=[pltpu.VMEM((BS, HIDDEN), jnp.float32)],
    )
    return pl.pallas_call(
        mammo_kernel,
        out_shape=jax.ShapeDtypeStruct((BATCH, NUM_CLASSES), jnp.float32),
        grid_spec=grid_spec,
        compiler_params=pltpu.CompilerParams(
            dimension_semantics=("arbitrary",)),
    )(*args)


def init_params(key):
    ks = jax.random.split(key, 16)

    def nrm(k, shape, s=0.02):
        return (s * jax.random.normal(k, shape)).astype(jnp.float32)

    # Deterministic synthetic weights (no checkpoint load).  Q/K/V are stored
    # pre-fused along the output dim; the attention scale 1/sqrt(head_dim) is
    # folded into the Q block at init time (free, removes in-kernel multiply).
    scale = 1.0 / math.sqrt(HEAD_DIM)
    w_qkv = nrm(ks[3], (NUM_LAYERS, HIDDEN, 3 * HIDDEN))
    b_qkv = nrm(ks[4], (NUM_LAYERS, 1, 3 * HIDDEN))
    w_qkv = w_qkv.at[:, :, :HIDDEN].multiply(scale)
    b_qkv = b_qkv.at[:, :, :HIDDEN].multiply(scale)

    return {
        "w_patch": nrm(ks[0], (PATCH_DIM, HIDDEN)),              # conv (bias=False)
        "cls":     nrm(ks[1], (1, HIDDEN)),
        "pos":     nrm(ks[2], (SEQ, HIDDEN)),
        "pre_w":   jnp.ones((1, HIDDEN), jnp.float32),
        "pre_b":   jnp.zeros((1, HIDDEN), jnp.float32),
        "ln1_w":   jnp.ones((NUM_LAYERS, 1, HIDDEN), jnp.float32),
        "ln1_b":   jnp.zeros((NUM_LAYERS, 1, HIDDEN), jnp.float32),
        "w_qkv":   w_qkv,
        "b_qkv":   b_qkv,
        "w_o":     nrm(ks[5], (NUM_LAYERS, HIDDEN, HIDDEN)),
        "b_o":     nrm(ks[6], (NUM_LAYERS, 1, HIDDEN)),
        "ln2_w":   jnp.ones((NUM_LAYERS, 1, HIDDEN), jnp.float32),
        "ln2_b":   jnp.zeros((NUM_LAYERS, 1, HIDDEN), jnp.float32),
        "fc1_w":   nrm(ks[7], (NUM_LAYERS, HIDDEN, MLP)),
        "fc1_b":   nrm(ks[8], (NUM_LAYERS, 1, MLP)),
        "fc2_w":   nrm(ks[9], (NUM_LAYERS, MLP, HIDDEN)),
        "fc2_b":   nrm(ks[10], (NUM_LAYERS, 1, HIDDEN)),
        "clf_w":   nrm(ks[11], (HIDDEN, NUM_CLASSES)),           # nn.Linear(hidden, nc)
        "clf_b":   jnp.zeros((1, NUM_CLASSES), jnp.float32),
    }


if __name__ == "__main__":
    key = jax.random.PRNGKey(0)
    k_img, k_par = jax.random.split(key)
    images = jax.random.normal(k_img, (BATCH, IN_CH, IMG, IMG), dtype=jnp.float32)
    params = init_params(k_par)

    logits = mammo_classification(images, params)
    logits = jax.block_until_ready(logits)

    assert logits.shape == (BATCH, NUM_CLASSES)
    assert bool(jnp.all(jnp.isfinite(logits)))
    print("KERNEL_OK")
</pallas_src>

<mosaic_0001>
module attributes {stable_mosaic.version = 11 : i64} {
  func.func @mammo_kernel(%arg0: i32, %arg1: memref<10x192xf32, #tpu.memory_space<vmem>>, %arg2: memref<192x32xbf16, #tpu.memory_space<vmem>>, %arg3: memref<10x32xf32, #tpu.memory_space<vmem>>, %arg4: memref<1x32xf32, #tpu.memory_space<vmem>>, %arg5: memref<1x32xf32, #tpu.memory_space<vmem>>, %arg6: memref<40x10xbf16, #tpu.memory_space<vmem>>, %arg7: memref<10x40xbf16, #tpu.memory_space<vmem>>, %arg8: memref<40x32xf32, #tpu.memory_space<vmem>>, %arg9: memref<40x10xf32, #tpu.memory_space<vmem>>, %arg10: memref<2x10xbf16, #tpu.memory_space<vmem>>, %arg11: memref<32x2xbf16, #tpu.memory_space<vmem>>, %arg12: memref<1x2xf32, #tpu.memory_space<vmem>>, %arg13: memref<1x1x32xf32, #tpu.memory_space<vmem>>, %arg14: memref<1x1x32xf32, #tpu.memory_space<vmem>>, %arg15: memref<1x32x96xbf16, #tpu.memory_space<vmem>>, %arg16: memref<1x1x96xf32, #tpu.memory_space<vmem>>, %arg17: memref<1x32x32xbf16, #tpu.memory_space<vmem>>, %arg18: memref<1x1x32xf32, #tpu.memory_space<vmem>>, %arg19: memref<1x1x32xf32, #tpu.memory_space<vmem>>, %arg20: memref<1x1x32xf32, #tpu.memory_space<vmem>>, %arg21: memref<1x32x128xbf16, #tpu.memory_space<vmem>>, %arg22: memref<1x1x128xf32, #tpu.memory_space<vmem>>, %arg23: memref<1x128x32xbf16, #tpu.memory_space<vmem>>, %arg24: memref<1x1x32xf32, #tpu.memory_space<vmem>>, %arg25: memref<2x2xf32, #tpu.memory_space<vmem>>, %arg26: memref<10x32xf32, #tpu.memory_space<vmem>>) attributes {dimension_semantics = [#tpu.dimension_semantics<arbitrary>], iteration_bounds = array<i64: 2>, scalar_prefetch = 0 : i64, scratch_operands = 1 : i64, tpu.core_type = #tpu.core_type<tc>, window_params = [{pipeline_mode = #tpu.pipeline_mode<synchronous>, transform_indices = @transform_0, window_bounds = array<i64: 10, 192>}, {pipeline_mode = #tpu.pipeline_mode<synchronous>, transform_indices = @transform_1, window_bounds = array<i64: 192, 32>}, {pipeline_mode = #tpu.pipeline_mode<synchronous>, transform_indices = @transform_2, window_bounds = array<i64: 10, 32>}, {pipeline_mode = #tpu.pipeline_mode<synchronous>, transform_indices = @transform_3, window_bounds = array<i64: 1, 32>}, {pipeline_mode = #tpu.pipeline_mode<synchronous>, transform_indices = @transform_4, window_bounds = array<i64: 1, 32>}, {pipeline_mode = #tpu.pipeline_mode<synchronous>, transform_indices = @transform_5, window_bounds = array<i64: 40, 10>}, {pipeline_mode = #tpu.pipeline_mode<synchronous>, transform_indices = @transform_6, window_bounds = array<i64: 10, 40>}, {pipeline_mode = #tpu.pipeline_mode<synchronous>, transform_indices = @transform_7, window_bounds = array<i64: 40, 32>}, {pipeline_mode = #tpu.pipeline_mode<synchronous>, transform_indices = @transform_8, window_bounds = array<i64: 40, 10>}, {pipeline_mode = #tpu.pipeline_mode<synchronous>, transform_indices = @transform_9, window_bounds = array<i64: 2, 10>}, {pipeline_mode = #tpu.pipeline_mode<synchronous>, transform_indices = @transform_10, window_bounds = array<i64: 32, 2>}, {pipeline_mode = #tpu.pipeline_mode<synchronous>, transform_indices = @transform_11, window_bounds = array<i64: 1, 2>}, {transform_indices = @transform_12, window_bounds = array<i64: 1, 1, 32>}, {transform_indices = @transform_13, window_bounds = array<i64: 1, 1, 32>}, {transform_indices = @transform_14, window_bounds = array<i64: 1, 32, 96>}, {transform_indices = @transform_15, window_bounds = array<i64: 1, 1, 96>}, {transform_indices = @transform_16, window_bounds = array<i64: 1, 32, 32>}, {transform_indices = @transform_17, window_bounds = array<i64: 1, 1, 32>}, {transform_indices = @transform_18, window_bounds = array<i64: 1, 1, 32>}, {transform_indices = @transform_19, window_bounds = array<i64: 1, 1, 32>}, {transform_indices = @transform_20, window_bounds = array<i64: 1, 32, 128>}, {transform_indices = @transform_21, window_bounds = array<i64: 1, 1, 128>}, {transform_indices = @transform_22, window_bounds = array<i64: 1, 128, 32>}, {transform_indices = @transform_23, window_bounds = array<i64: 1, 1, 32>}, {pipeline_mode = #tpu.pipeline_mode<synchronous>, transform_indices = @transform_24, window_bounds = array<i64: 2, 2>}]} {
    %c0_i32 = arith.constant 0 : i32
    %0 = arith.cmpi eq, %arg0, %c0_i32 : i32
    %1 = arith.extui %0 : i1 to i32
    %c0_i32_0 = arith.constant 0 : i32
    %2 = arith.cmpi ne, %1, %c0_i32_0 : i32
    scf.if %2 {
      %c0_72 = arith.constant 0 : index
      %c0_73 = arith.constant 0 : index
      %133 = vector.load %arg1[%c0_72, %c0_73] : memref<10x192xf32, #tpu.memory_space<vmem>>, vector<10x192xf32>
      %c0_74 = arith.constant 0 : index
      %c0_75 = arith.constant 0 : index
      %134 = vector.load %arg2[%c0_74, %c0_75] : memref<192x32xbf16, #tpu.memory_space<vmem>>, vector<192x32xbf16>
      %135 = arith.truncf %133 : vector<10x192xf32> to vector<10x192xbf16>
      %cst_76 = arith.constant dense<0.000000e+00> : vector<10x32xf32>
      %136 = tpu.matmul %135, %134, %cst_76 {dimension_numbers = #tpu.dot_dimension_numbers<[1], [0], [0], [1], [0, 0, 1, 1], [], []>} : vector<10x192xbf16>, vector<192x32xbf16>, vector<10x32xf32> -> vector<10x32xf32>
      %c0_77 = arith.constant 0 : index
      %c0_78 = arith.constant 0 : index
      %137 = vector.load %arg3[%c0_77, %c0_78] : memref<10x32xf32, #tpu.memory_space<vmem>>, vector<10x32xf32>
      %138 = arith.addf %136, %137 : vector<10x32xf32>
      %c0_79 = arith.constant 0 : index
      %c0_80 = arith.constant 0 : index
      %139 = vector.load %arg4[%c0_79, %c0_80] : memref<1x32xf32, #tpu.memory_space<vmem>>, vector<1x32xf32>
      %c0_81 = arith.constant 0 : index
      %c0_82 = arith.constant 0 : index
      %140 = vector.load %arg5[%c0_81, %c0_82] : memref<1x32xf32, #tpu.memory_space<vmem>>, vector<1x32xf32>
      %cst_83 = arith.constant dense<0.000000e+00> : vector<10xf32>
      %141 = vector.multi_reduction <add>, %138, %cst_83 [1] : vector<10x32xf32> to vector<10xf32>
      %142 = vector.shape_cast %141 : vector<10xf32> to vector<10x1xf32>
      %cst_84 = arith.constant 3.200000e+01 : f32
      %143 = vector.broadcast %cst_84 : f32 to vector<10x1xf32>
      %144 = arith.divf %142, %143 : vector<10x1xf32>
      %145 = vector.broadcast %144 : vector<10x1xf32> to vector<10x32xf32>
      %146 = arith.subf %138, %145 : vector<10x32xf32>
      %147 = arith.mulf %146, %146 : vector<10x32xf32>
      %cst_85 = arith.constant dense<0.000000e+00> : vector<10xf32>
      %148 = vector.multi_reduction <add>, %147, %cst_85 [1] : vector<10x32xf32> to vector<10xf32>
      %149 = vector.shape_cast %148 : vector<10xf32> to vector<10x1xf32>
      %cst_86 = arith.constant 3.200000e+01 : f32
      %150 = vector.broadcast %cst_86 : f32 to vector<10x1xf32>
      %151 = arith.divf %149, %150 : vector<10x1xf32>
      %152 = vector.broadcast %144 : vector<10x1xf32> to vector<10x32xf32>
      %153 = arith.subf %138, %152 : vector<10x32xf32>
      %cst_87 = arith.constant 9.99999974E-6 : f32
      %154 = vector.broadcast %cst_87 : f32 to vector<10x1xf32>
      %155 = arith.addf %151, %154 : vector<10x1xf32>
      %156 = math.rsqrt %155 : vector<10x1xf32>
      %157 = vector.broadcast %156 : vector<10x1xf32> to vector<10x32xf32>
      %158 = arith.mulf %153, %157 : vector<10x32xf32>
      %159 = vector.broadcast %139 : vector<1x32xf32> to vector<10x32xf32>
      %160 = arith.mulf %158, %159 : vector<10x32xf32>
      %161 = vector.broadcast %140 : vector<1x32xf32> to vector<10x32xf32>
      %162 = arith.addf %160, %161 : vector<10x32xf32>
      %c0_88 = arith.constant 0 : index
      %c0_89 = arith.constant 0 : index
      %163 = vector.load %arg26[%c0_88, %c0_89] : memref<10x32xf32, #tpu.memory_space<vmem>>, vector<10x32xf32>
      tpu.vector_store %arg26[%c0_88, %c0_89], %162 {strides = array<i32>} : memref<10x32xf32, #tpu.memory_space<vmem>>, vector<10x32xf32>,
    } else {
    }
    %c0 = arith.constant 0 : index
    %c0_1 = arith.constant 0 : index
    %3 = vector.load %arg26[%c0, %c0_1] : memref<10x32xf32, #tpu.memory_space<vmem>>, vector<10x32xf32>
    %c0_2 = arith.constant 0 : index
    %c0_3 = arith.constant 0 : index
    %c0_4 = arith.constant 0 : index
    %4 = vector.load %arg13[%c0_2, %c0_3, %c0_4] : memref<1x1x32xf32, #tpu.memory_space<vmem>>, vector<1x1x32xf32>
    %5 = vector.shape_cast %4 : vector<1x1x32xf32> to vector<1x32xf32>
    %c0_5 = arith.constant 0 : index
    %c0_6 = arith.constant 0 : index
    %c0_7 = arith.constant 0 : index
    %6 = vector.load %arg14[%c0_5, %c0_6, %c0_7] : memref<1x1x32xf32, #tpu.memory_space<vmem>>, vector<1x1x32xf32>
    %7 = vector.shape_cast %6 : vector<1x1x32xf32> to vector<1x32xf32>
    %cst = arith.constant dense<0.000000e+00> : vector<10xf32>
    %8 = vector.multi_reduction <add>, %3, %cst [1] : vector<10x32xf32> to vector<10xf32>
    %9 = vector.shape_cast %8 : vector<10xf32> to vector<10x1xf32>
    %cst_8 = arith.constant 3.200000e+01 : f32
    %10 = vector.broadcast %cst_8 : f32 to vector<10x1xf32>
    %11 = arith.divf %9, %10 : vector<10x1xf32>
    %12 = vector.broadcast %11 : vector<10x1xf32> to vector<10x32xf32>
    %13 = arith.subf %3, %12 : vector<10x32xf32>
    %14 = arith.mulf %13, %13 : vector<10x32xf32>
    %cst_9 = arith.constant dense<0.000000e+00> : vector<10xf32>
    %15 = vector.multi_reduction <add>, %14, %cst_9 [1] : vector<10x32xf32> to vector<10xf32>
    %16 = vector.shape_cast %15 : vector<10xf32> to vector<10x1xf32>
    %cst_10 = arith.constant 3.200000e+01 : f32
    %17 = vector.broadcast %cst_10 : f32 to vector<10x1xf32>
    %18 = arith.divf %16, %17 : vector<10x1xf32>
    %19 = vector.broadcast %11 : vector<10x1xf32> to vector<10x32xf32>
    %20 = arith.subf %3, %19 : vector<10x32xf32>
    %cst_11 = arith.constant 9.99999974E-6 : f32
    %21 = vector.broadcast %cst_11 : f32 to vector<10x1xf32>
    %22 = arith.addf %18, %21 : vector<10x1xf32>
    %23 = math.rsqrt %22 : vector<10x1xf32>
    %24 = vector.broadcast %23 : vector<10x1xf32> to vector<10x32xf32>
    %25 = arith.mulf %20, %24 : vector<10x32xf32>
    %26 = vector.broadcast %5 : vector<1x32xf32> to vector<10x32xf32>
    %27 = arith.mulf %25, %26 : vector<10x32xf32>
    %28 = vector.broadcast %7 : vector<1x32xf32> to vector<10x32xf32>
    %29 = arith.addf %27, %28 : vector<10x32xf32>
    %c0_12 = arith.constant 0 : index
    %c0_13 = arith.constant 0 : index
    %c0_14 = arith.constant 0 : index
    %30 = vector.load %arg15[%c0_12, %c0_13, %c0_14] : memref<1x32x96xbf16, #tpu.memory_space<vmem>>, vector<1x32x96xbf16>
    %31 = vector.shape_cast %30 : vector<1x32x96xbf16> to vector<32x96xbf16>
    %32 = arith.truncf %29 : vector<10x32xf32> to vector<10x32xbf16>
    %cst_15 = arith.constant dense<0.000000e+00> : vector<10x96xf32>
    %33 = tpu.matmul %32, %31, %cst_15 {dimension_numbers = #tpu.dot_dimension_numbers<[1], [0], [0], [1], [0, 0, 1, 1], [], []>} : vector<10x32xbf16>, vector<32x96xbf16>, vector<10x96xf32> -> vector<10x96xf32>
    %c0_16 = arith.constant 0 : index
    %c0_17 = arith.constant 0 : index
    %c0_18 = arith.constant 0 : index
    %34 = vector.load %arg16[%c0_16, %c0_17, %c0_18] : memref<1x1x96xf32, #tpu.memory_space<vmem>>, vector<1x1x96xf32>
    %35 = vector.shape_cast %34 : vector<1x1x96xf32> to vector<1x96xf32>
    %36 = vector.broadcast %35 : vector<1x96xf32> to vector<10x96xf32>
    %37 = arith.addf %33, %36 : vector<10x96xf32>
    %38 = vector.extract_strided_slice %37 {offsets = [0, 0], sizes = [10, 32], strides = [1, 1]} : vector<10x96xf32> to vector<10x32xf32>
    %39 = vector.extract_strided_slice %37 {offsets = [0, 32], sizes = [10, 32], strides = [1, 1]} : vector<10x96xf32> to vector<10x32xf32>
    %40 = vector.extract_strided_slice %37 {offsets = [0, 64], sizes = [10, 32], strides = [1, 1]} : vector<10x96xf32> to vector<10x32xf32>
    %c0_19 = arith.constant 0 : index
    %c0_20 = arith.constant 0 : index
    %41 = vector.load %arg6[%c0_19, %c0_20] : memref<40x10xbf16, #tpu.memory_space<vmem>>, vector<40x10xbf16>
    %42 = arith.truncf %38 : vector<10x32xf32> to vector<10x32xbf16>
    %cst_21 = arith.constant dense<0.000000e+00> : vector<40x32xf32>
    %43 = tpu.matmul %41, %42, %cst_21 {dimension_numbers = #tpu.dot_dimension_numbers<[1], [0], [0], [1], [0, 0, 1, 1], [], []>} : vector<40x10xbf16>, vector<10x32xbf16>, vector<40x32xf32> -> vector<40x32xf32>
    %c0_22 = arith.constant 0 : index
    %c0_23 = arith.constant 0 : index
    %44 = vector.load %arg8[%c0_22, %c0_23] : memref<40x32xf32, #tpu.memory_space<vmem>>, vector<40x32xf32>
    %45 = arith.mulf %43, %44 : vector<40x32xf32>
    %46 = arith.truncf %45 : vector<40x32xf32> to vector<40x32xbf16>
    %47 = arith.truncf %39 : vector<10x32xf32> to vector<10x32xbf16>
    %cst_24 = arith.constant dense<0.000000e+00> : vector<40x10xf32>
    %48 = tpu.matmul %46, %47, %cst_24 {dimension_numbers = #tpu.dot_dimension_numbers<[1], [1], [0], [0], [0, 0, 1, 0], [], []>} : vector<40x32xbf16>, vector<10x32xbf16>, vector<40x10xf32> -> vector<40x10xf32>
    %c0_25 = arith.constant 0 : index
    %c0_26 = arith.constant 0 : index
    %49 = vector.load %arg9[%c0_25, %c0_26] : memref<40x10xf32, #tpu.memory_space<vmem>>, vector<40x10xf32>
    %50 = arith.addf %48, %49 : vector<40x10xf32>
    %cst_27 = arith.constant dense<0xFF800000> : vector<40xf32>
    %51 = vector.multi_reduction <maximumf>, %50, %cst_27 [1] : vector<40x10xf32> to vector<40xf32>
    %52 = vector.shape_cast %51 : vector<40xf32> to vector<40x1xf32>
    %53 = vector.broadcast %52 : vector<40x1xf32> to vector<40x10xf32>
    %54 = arith.subf %50, %53 : vector<40x10xf32>
    %55 = math.exp %54 : vector<40x10xf32>
    %cst_28 = arith.constant dense<0.000000e+00> : vector<40xf32>
    %56 = vector.multi_reduction <add>, %55, %cst_28 [1] : vector<40x10xf32> to vector<40xf32>
    %57 = vector.shape_cast %56 : vector<40xf32> to vector<40x1xf32>
    %58 = tpu.reciprocal %57 {approx = true} : vector<40x1xf32> -> vector<40x1xf32>
    %59 = vector.broadcast %58 : vector<40x1xf32> to vector<40x10xf32>
    %60 = arith.mulf %55, %59 : vector<40x10xf32>
    %61 = arith.truncf %60 : vector<40x10xf32> to vector<40x10xbf16>
    %62 = arith.truncf %40 : vector<10x32xf32> to vector<10x32xbf16>
    %cst_29 = arith.constant dense<0.000000e+00> : vector<40x32xf32>
    %63 = tpu.matmul %61, %62, %cst_29 {dimension_numbers = #tpu.dot_dimension_numbers<[1], [0], [0], [1], [0, 0, 1, 1], [], []>} : vector<40x10xbf16>, vector<10x32xbf16>, vector<40x32xf32> -> vector<40x32xf32>
    %c0_30 = arith.constant 0 : index
    %c0_31 = arith.constant 0 : index
    %64 = vector.load %arg7[%c0_30, %c0_31] : memref<10x40xbf16, #tpu.memory_space<vmem>>, vector<10x40xbf16>
    %c0_32 = arith.constant 0 : index
    %c0_33 = arith.constant 0 : index
    %65 = vector.load %arg8[%c0_32, %c0_33] : memref<40x32xf32, #tpu.memory_space<vmem>>, vector<40x32xf32>
    %66 = arith.mulf %63, %65 : vector<40x32xf32>
    %67 = arith.truncf %66 : vector<40x32xf32> to vector<40x32xbf16>
    %cst_34 = arith.constant dense<0.000000e+00> : vector<10x32xf32>
    %68 = tpu.matmul %64, %67, %cst_34 {dimension_numbers = #tpu.dot_dimension_numbers<[1], [0], [0], [1], [0, 0, 1, 1], [], []>} : vector<10x40xbf16>, vector<40x32xbf16>, vector<10x32xf32> -> vector<10x32xf32>
    %c0_35 = arith.constant 0 : index
    %c0_36 = arith.constant 0 : index
    %c0_37 = arith.constant 0 : index
    %69 = vector.load %arg17[%c0_35, %c0_36, %c0_37] : memref<1x32x32xbf16, #tpu.memory_space<vmem>>, vector<1x32x32xbf16>
    %70 = vector.shape_cast %69 : vector<1x32x32xbf16> to vector<32x32xbf16>
    %71 = arith.truncf %68 : vector<10x32xf32> to vector<10x32xbf16>
    %cst_38 = arith.constant dense<0.000000e+00> : vector<10x32xf32>
    %72 = tpu.matmul %71, %70, %cst_38 {dimension_numbers = #tpu.dot_dimension_numbers<[1], [0], [0], [1], [0, 0, 1, 1], [], []>} : vector<10x32xbf16>, vector<32x32xbf16>, vector<10x32xf32> -> vector<10x32xf32>
    %73 = arith.addf %3, %72 : vector<10x32xf32>
    %c0_39 = arith.constant 0 : index
    %c0_40 = arith.constant 0 : index
    %c0_41 = arith.constant 0 : index
    %74 = vector.load %arg18[%c0_39, %c0_40, %c0_41] : memref<1x1x32xf32, #tpu.memory_space<vmem>>, vector<1x1x32xf32>
    %75 = vector.shape_cast %74 : vector<1x1x32xf32> to vector<1x32xf32>
    %76 = vector.broadcast %75 : vector<1x32xf32> to vector<10x32xf32>
    %77 = arith.addf %73, %76 : vector<10x32xf32>
    %c0_42 = arith.constant 0 : index
    %c0_43 = arith.constant 0 : index
    %c0_44 = arith.constant 0 : index
    %78 = vector.load %arg19[%c0_42, %c0_43, %c0_44] : memref<1x1x32xf32, #tpu.memory_space<vmem>>, vector<1x1x32xf32>
    %79 = vector.shape_cast %78 : vector<1x1x32xf32> to vector<1x32xf32>
    %c0_45 = arith.constant 0 : index
    %c0_46 = arith.constant 0 : index
    %c0_47 = arith.constant 0 : index
    %80 = vector.load %arg20[%c0_45, %c0_46, %c0_47] : memref<1x1x32xf32, #tpu.memory_space<vmem>>, vector<1x1x32xf32>
    %81 = vector.shape_cast %80 : vector<1x1x32xf32> to vector<1x32xf32>
    %cst_48 = arith.constant dense<0.000000e+00> : vector<10xf32>
    %82 = vector.multi_reduction <add>, %77, %cst_48 [1] : vector<10x32xf32> to vector<10xf32>
    %83 = vector.shape_cast %82 : vector<10xf32> to vector<10x1xf32>
    %cst_49 = arith.constant 3.200000e+01 : f32
    %84 = vector.broadcast %cst_49 : f32 to vector<10x1xf32>
    %85 = arith.divf %83, %84 : vector<10x1xf32>
    %86 = vector.broadcast %85 : vector<10x1xf32> to vector<10x32xf32>
    %87 = arith.subf %77, %86 : vector<10x32xf32>
    %88 = arith.mulf %87, %87 : vector<10x32xf32>
    %cst_50 = arith.constant dense<0.000000e+00> : vector<10xf32>
    %89 = vector.multi_reduction <add>, %88, %cst_50 [1] : vector<10x32xf32> to vector<10xf32>
    %90 = vector.shape_cast %89 : vector<10xf32> to vector<10x1xf32>
    %cst_51 = arith.constant 3.200000e+01 : f32
    %91 = vector.broadcast %cst_51 : f32 to vector<10x1xf32>
    %92 = arith.divf %90, %91 : vector<10x1xf32>
    %93 = vector.broadcast %85 : vector<10x1xf32> to vector<10x32xf32>
    %94 = arith.subf %77, %93 : vector<10x32xf32>
    %cst_52 = arith.constant 9.99999974E-6 : f32
    %95 = vector.broadcast %cst_52 : f32 to vector<10x1xf32>
    %96 = arith.addf %92, %95 : vector<10x1xf32>
    %97 = math.rsqrt %96 : vector<10x1xf32>
    %98 = vector.broadcast %97 : vector<10x1xf32> to vector<10x32xf32>
    %99 = arith.mulf %94, %98 : vector<10x32xf32>
    %100 = vector.broadcast %79 : vector<1x32xf32> to vector<10x32xf32>
    %101 = arith.mulf %99, %100 : vector<10x32xf32>
    %102 = vector.broadcast %81 : vector<1x32xf32> to vector<10x32xf32>
    %103 = arith.addf %101, %102 : vector<10x32xf32>
    %c0_53 = arith.constant 0 : index
    %c0_54 = arith.constant 0 : index
    %c0_55 = arith.constant 0 : index
    %104 = vector.load %arg21[%c0_53, %c0_54, %c0_55] : memref<1x32x128xbf16, #tpu.memory_space<vmem>>, vector<1x32x128xbf16>
    %105 = vector.shape_cast %104 : vector<1x32x128xbf16> to vector<32x128xbf16>
    %106 = arith.truncf %103 : vector<10x32xf32> to vector<10x32xbf16>
    %cst_56 = arith.constant dense<0.000000e+00> : vector<10x128xf32>
    %107 = tpu.matmul %106, %105, %cst_56 {dimension_numbers = #tpu.dot_dimension_numbers<[1], [0], [0], [1], [0, 0, 1, 1], [], []>} : vector<10x32xbf16>, vector<32x128xbf16>, vector<10x128xf32> -> vector<10x128xf32>
    %c0_57 = arith.constant 0 : index
    %c0_58 = arith.constant 0 : index
    %c0_59 = arith.constant 0 : index
    %108 = vector.load %arg22[%c0_57, %c0_58, %c0_59] : memref<1x1x128xf32, #tpu.memory_space<vmem>>, vector<1x1x128xf32>
    %109 = vector.shape_cast %108 : vector<1x1x128xf32> to vector<1x128xf32>
    %110 = vector.broadcast %109 : vector<1x128xf32> to vector<10x128xf32>
    %111 = arith.addf %107, %110 : vector<10x128xf32>
    %cst_60 = arith.constant 1.702000e+00 : f32
    %112 = vector.broadcast %cst_60 : f32 to vector<10x128xf32>
    %113 = arith.mulf %112, %111 : vector<10x128xf32>
    %114 = arith.negf %113 : vector<10x128xf32>
    %115 = math.exp %114 : vector<10x128xf32>
    %cst_61 = arith.constant 1.000000e+00 : f32
    %116 = vector.broadcast %cst_61 : f32 to vector<10x128xf32>
    %117 = arith.addf %116, %115 : vector<10x128xf32>
    %118 = arith.divf %116, %117 : vector<10x128xf32>
    %119 = arith.mulf %111, %118 : vector<10x128xf32>
    %c0_62 = arith.constant 0 : index
    %c0_63 = arith.constant 0 : index
    %c0_64 = arith.constant 0 : index
    %120 = vector.load %arg23[%c0_62, %c0_63, %c0_64] : memref<1x128x32xbf16, #tpu.memory_space<vmem>>, vector<1x128x32xbf16>
    %121 = vector.shape_cast %120 : vector<1x128x32xbf16> to vector<128x32xbf16>
    %122 = arith.truncf %119 : vector<10x128xf32> to vector<10x128xbf16>
    %cst_65 = arith.constant dense<0.000000e+00> : vector<10x32xf32>
    %123 = tpu.matmul %122, %121, %cst_65 {dimension_numbers = #tpu.dot_dimension_numbers<[1], [0], [0], [1], [0, 0, 1, 1], [], []>} : vector<10x128xbf16>, vector<128x32xbf16>, vector<10x32xf32> -> vector<10x32xf32>
    %124 = arith.addf %77, %123 : vector<10x32xf32>
    %c0_66 = arith.constant 0 : index
    %c0_67 = arith.constant 0 : index
    %c0_68 = arith.constant 0 : index
    %125 = vector.load %arg24[%c0_66, %c0_67, %c0_68] : memref<1x1x32xf32, #tpu.memory_space<vmem>>, vector<1x1x32xf32>
    %126 = vector.shape_cast %125 : vector<1x1x32xf32> to vector<1x32xf32>
    %127 = vector.broadcast %126 : vector<1x32xf32> to vector<10x32xf32>
    %128 = arith.addf %124, %127 : vector<10x32xf32>
    %c0_69 = arith.constant 0 : index
    %c0_70 = arith.constant 0 : index
    %129 = vector.load %arg26[%c0_69, %c0_70] : memref<10x32xf32, #tpu.memory_space<vmem>>, vector<10x32xf32>
    tpu.vector_store %arg26[%c0_69, %c0_70], %128 {strides = array<i32>} : memref<10x32xf32, #tpu.memory_space<vmem>>, vector<10x32xf32>,
    %c1_i32 = arith.constant 1 : i32
    %130 = arith.cmpi eq, %arg0, %c1_i32 : i32
    %131 = arith.extui %130 : i1 to i32
    %c0_i32_71 = arith.constant 0 : i32
    %132 = arith.cmpi ne, %131, %c0_i32_71 : i32
    scf.if %132 {
      %c0_72 = arith.constant 0 : index
      %c0_73 = arith.constant 0 : index
      %133 = vector.load %arg10[%c0_72, %c0_73] : memref<2x10xbf16, #tpu.memory_space<vmem>>, vector<2x10xbf16>
      %134 = arith.truncf %128 : vector<10x32xf32> to vector<10x32xbf16>
      %cst_74 = arith.constant dense<0.000000e+00> : vector<2x32xf32>
      %135 = tpu.matmul %133, %134, %cst_74 {dimension_numbers = #tpu.dot_dimension_numbers<[1], [0], [0], [1], [0, 0, 1, 1], [], []>} : vector<2x10xbf16>, vector<10x32xbf16>, vector<2x32xf32> -> vector<2x32xf32>
      %c0_75 = arith.constant 0 : index
      %c0_76 = arith.constant 0 : index
      %136 = vector.load %arg11[%c0_75, %c0_76] : memref<32x2xbf16, #tpu.memory_space<vmem>>, vector<32x2xbf16>
      %137 = arith.truncf %135 : vector<2x32xf32> to vector<2x32xbf16>
      %cst_77 = arith.constant dense<0.000000e+00> : vector<2x2xf32>
      %138 = tpu.matmul %137, %136, %cst_77 {dimension_numbers = #tpu.dot_dimension_numbers<[1], [0], [0], [1], [0, 0, 1, 1], [], []>} : vector<2x32xbf16>, vector<32x2xbf16>, vector<2x2xf32> -> vector<2x2xf32>
      %c0_78 = arith.constant 0 : index
      %c0_79 = arith.constant 0 : index
      %139 = vector.load %arg12[%c0_78, %c0_79] : memref<1x2xf32, #tpu.memory_space<vmem>>, vector<1x2xf32>
      %140 = vector.broadcast %139 : vector<1x2xf32> to vector<2x2xf32>
      %141 = arith.addf %138, %140 : vector<2x2xf32>
      %c0_80 = arith.constant 0 : index
      %c0_81 = arith.constant 0 : index
      %142 = vector.load %arg25[%c0_80, %c0_81] : memref<2x2xf32, #tpu.memory_space<vmem>>, vector<2x2xf32>
      tpu.vector_store %arg25[%c0_80, %c0_81], %141 {strides = array<i32>} : memref<2x2xf32, #tpu.memory_space<vmem>>, vector<2x2xf32>,
    } else {
    }
    return
  }
  func.func @transform_0(%arg0: i32) -> (i32, i32) {
    %c0_i32 = arith.constant 0 : i32
    %c0_i32_0 = arith.constant 0 : i32
    %c0_i32_1 = arith.constant 0 : i32
    return %c0_i32, %c0_i32_0 : i32, i32
  }
  func.func @transform_1(%arg0: i32) -> (i32, i32) {
    %c0_i32 = arith.constant 0 : i32
    %c0_i32_0 = arith.constant 0 : i32
    %c0_i32_1 = arith.constant 0 : i32
    return %c0_i32, %c0_i32_0 : i32, i32
  }
  func.func @transform_2(%arg0: i32) -> (i32, i32) {
    %c0_i32 = arith.constant 0 : i32
    %c0_i32_0 = arith.constant 0 : i32
    %c0_i32_1 = arith.constant 0 : i32
    return %c0_i32, %c0_i32_0 : i32, i32
  }
  func.func @transform_3(%arg0: i32) -> (i32, i32) {
    %c0_i32 = arith.constant 0 : i32
    %c0_i32_0 = arith.constant 0 : i32
    %c0_i32_1 = arith.constant 0 : i32
    return %c0_i32, %c0_i32_0 : i32, i32
  }
  func.func @transform_4(%arg0: i32) -> (i32, i32) {
    %c0_i32 = arith.constant 0 : i32
    %c0_i32_0 = arith.constant 0 : i32
    %c0_i32_1 = arith.constant 0 : i32
    return %c0_i32, %c0_i32_0 : i32, i32
  }
  func.func @transform_5(%arg0: i32) -> (i32, i32) {
    %c0_i32 = arith.constant 0 : i32
    %c0_i32_0 = arith.constant 0 : i32
    %c0_i32_1 = arith.constant 0 : i32
    return %c0_i32, %c0_i32_0 : i32, i32
  }
  func.func @transform_6(%arg0: i32) -> (i32, i32) {
    %c0_i32 = arith.constant 0 : i32
    %c0_i32_0 = arith.constant 0 : i32
    %c0_i32_1 = arith.constant 0 : i32
    return %c0_i32, %c0_i32_0 : i32, i32
  }
  func.func @transform_7(%arg0: i32) -> (i32, i32) {
    %c0_i32 = arith.constant 0 : i32
    %c0_i32_0 = arith.constant 0 : i32
    %c0_i32_1 = arith.constant 0 : i32
    return %c0_i32, %c0_i32_0 : i32, i32
  }
  func.func @transform_8(%arg0: i32) -> (i32, i32) {
    %c0_i32 = arith.constant 0 : i32
    %c0_i32_0 = arith.constant 0 : i32
    %c0_i32_1 = arith.constant 0 : i32
    return %c0_i32, %c0_i32_0 : i32, i32
  }
  func.func @transform_9(%arg0: i32) -> (i32, i32) {
    %c0_i32 = arith.constant 0 : i32
    %c0_i32_0 = arith.constant 0 : i32
    %c0_i32_1 = arith.constant 0 : i32
    return %c0_i32, %c0_i32_0 : i32, i32
  }
  func.func @transform_10(%arg0: i32) -> (i32, i32) {
    %c0_i32 = arith.constant 0 : i32
    %c0_i32_0 = arith.constant 0 : i32
    %c0_i32_1 = arith.constant 0 : i32
    return %c0_i32, %c0_i32_0 : i32, i32
  }
  func.func @transform_11(%arg0: i32) -> (i32, i32) {
    %c0_i32 = arith.constant 0 : i32
    %c0_i32_0 = arith.constant 0 : i32
    %c0_i32_1 = arith.constant 0 : i32
    return %c0_i32, %c0_i32_0 : i32, i32
  }
  func.func @transform_12(%arg0: i32) -> (i32, i32, i32) {
    %c0_i32 = arith.constant 0 : i32
    %c0_i32_0 = arith.constant 0 : i32
    %c0_i32_1 = arith.constant 0 : i32
    return %arg0, %c0_i32, %c0_i32_0 : i32, i32, i32
  }
  func.func @transform_13(%arg0: i32) -> (i32, i32, i32) {
    %c0_i32 = arith.constant 0 : i32
    %c0_i32_0 = arith.constant 0 : i32
    %c0_i32_1 = arith.constant 0 : i32
    return %arg0, %c0_i32, %c0_i32_0 : i32, i32, i32
  }
  func.func @transform_14(%arg0: i32) -> (i32, i32, i32) {
    %c0_i32 = arith.constant 0 : i32
    %c0_i32_0 = arith.constant 0 : i32
    %c0_i32_1 = arith.constant 0 : i32
    return %arg0, %c0_i32, %c0_i32_0 : i32, i32, i32
  }
  func.func @transform_15(%arg0: i32) -> (i32, i32, i32) {
    %c0_i32 = arith.constant 0 : i32
    %c0_i32_0 = arith.constant 0 : i32
    %c0_i32_1 = arith.constant 0 : i32
    return %arg0, %c0_i32, %c0_i32_0 : i32, i32, i32
  }
  func.func @transform_16(%arg0: i32) -> (i32, i32, i32) {
    %c0_i32 = arith.constant 0 : i32
    %c0_i32_0 = arith.constant 0 : i32
    %c0_i32_1 = arith.constant 0 : i32
    return %arg0, %c0_i32, %c0_i32_0 : i32, i32, i32
  }
  func.func @transform_17(%arg0: i32) -> (i32, i32, i32) {
    %c0_i32 = arith.constant 0 : i32
    %c0_i32_0 = arith.constant 0 : i32
    %c0_i32_1 = arith.constant 0 : i32
    return %arg0, %c0_i32, %c0_i32_0 : i32, i32, i32
  }
  func.func @transform_18(%arg0: i32) -> (i32, i32, i32) {
    %c0_i32 = arith.constant 0 : i32
    %c0_i32_0 = arith.constant 0 : i32
    %c0_i32_1 = arith.constant 0 : i32
    return %arg0, %c0_i32, %c0_i32_0 : i32, i32, i32
  }
  func.func @transform_19(%arg0: i32) -> (i32, i32, i32) {
    %c0_i32 = arith.constant 0 : i32
    %c0_i32_0 = arith.constant 0 : i32
    %c0_i32_1 = arith.constant 0 : i32
    return %arg0, %c0_i32, %c0_i32_0 : i32, i32, i32
  }
  func.func @transform_20(%arg0: i32) -> (i32, i32, i32) {
    %c0_i32 = arith.constant 0 : i32
    %c0_i32_0 = arith.constant 0 : i32
    %c0_i32_1 = arith.constant 0 : i32
    return %arg0, %c0_i32, %c0_i32_0 : i32, i32, i32
  }
  func.func @transform_21(%arg0: i32) -> (i32, i32, i32) {
    %c0_i32 = arith.constant 0 : i32
    %c0_i32_0 = arith.constant 0 : i32
    %c0_i32_1 = arith.constant 0 : i32
    return %arg0, %c0_i32, %c0_i32_0 : i32, i32, i32
  }
  func.func @transform_22(%arg0: i32) -> (i32, i32, i32) {
    %c0_i32 = arith.constant 0 : i32
    %c0_i32_0 = arith.constant 0 : i32
    %c0_i32_1 = arith.constant 0 : i32
    return %arg0, %c0_i32, %c0_i32_0 : i32, i32, i32
  }
  func.func @transform_23(%arg0: i32) -> (i32, i32, i32) {
    %c0_i32 = arith.constant 0 : i32
    %c0_i32_0 = arith.constant 0 : i32
    %c0_i32_1 = arith.constant 0 : i32
    return %arg0, %c0_i32, %c0_i32_0 : i32, i32, i32
  }
  func.func @transform_24(%arg0: i32) -> (i32, i32) {
    %c0_i32 = arith.constant 0 : i32
    %c0_i32_0 = arith.constant 0 : i32
    %c0_i32_1 = arith.constant 0 : i32
    return %c0_i32, %c0_i32_0 : i32, i32
  }
}

</mosaic_0001>

<llo_original>
// kernel: tpu_custom_call.1
$region0: #{tpu_custom_call.1}
  #allocation0 [shape = 'u32[]', space=smem, size = 0x4, offset = 0x4, fixed_abs, tag = 'smem constant byte address 0x4 - core index']
  #allocation1 [shape = 'u32[144,128]{1,0:T(1,128)}', space=vmem, size = 0x12000, scoped, tag = 'internal scratch']
  #allocation2 [shape = 'f32[10,32]{1,0:T(8,128)}', space=vmem, size = 0x2000, scoped, tag = 'scratch operand']
  %s0 = inlined_call_operand.vmem [shape: f32[10,192], index: 0, kind: input, shape index: {}]
  %s1 = inlined_call_operand.vmem [shape: bf16[192,32], index: 1, kind: input, shape index: {}]
  %s2 = inlined_call_operand.vmem [shape: f32[10,32], index: 2, kind: input, shape index: {}]
  %s3 = inlined_call_operand.vmem [shape: f32[1,32], index: 3, kind: input, shape index: {}]
  %s4 = inlined_call_operand.vmem [shape: f32[1,32], index: 4, kind: input, shape index: {}]
  %s5 = inlined_call_operand.vmem [shape: bf16[40,10], index: 5, kind: input, shape index: {}]
  %s6 = inlined_call_operand.vmem [shape: bf16[10,40], index: 6, kind: input, shape index: {}]
  %s7 = inlined_call_operand.vmem [shape: f32[40,32], index: 7, kind: input, shape index: {}]
  %s8 = inlined_call_operand.vmem [shape: f32[40,10], index: 8, kind: input, shape index: {}]
  %s9 = inlined_call_operand.vmem [shape: bf16[2,10], index: 9, kind: input, shape index: {}]
  %s10 = inlined_call_operand.vmem [shape: bf16[32,2], index: 10, kind: input, shape index: {}]
  %s11 = inlined_call_operand.vmem [shape: f32[1,2], index: 11, kind: input, shape index: {}]
  %s12 = inlined_call_operand.vmem [shape: f32[2,1,32], index: 12, kind: input, shape index: {}]
  %s13 = inlined_call_operand.vmem [shape: f32[2,1,32], index: 13, kind: input, shape index: {}]
  %s14 = inlined_call_operand.vmem [shape: bf16[2,32,96], index: 14, kind: input, shape index: {}]
  %s15 = inlined_call_operand.vmem [shape: f32[2,1,96], index: 15, kind: input, shape index: {}]
  %s16 = inlined_call_operand.vmem [shape: bf16[2,32,32], index: 16, kind: input, shape index: {}]
  %s17 = inlined_call_operand.vmem [shape: f32[2,1,32], index: 17, kind: input, shape index: {}]
  %s18 = inlined_call_operand.vmem [shape: f32[2,1,32], index: 18, kind: input, shape index: {}]
  %s19 = inlined_call_operand.vmem [shape: f32[2,1,32], index: 19, kind: input, shape index: {}]
  %s20 = inlined_call_operand.vmem [shape: bf16[2,32,128], index: 20, kind: input, shape index: {}]
  %s21 = inlined_call_operand.vmem [shape: f32[2,1,128], index: 21, kind: input, shape index: {}]
  %s22 = inlined_call_operand.vmem [shape: bf16[2,128,32], index: 22, kind: input, shape index: {}]
  %s23 = inlined_call_operand.vmem [shape: f32[2,1,32], index: 23, kind: input, shape index: {}]
  %s24 = inlined_call_operand.hbm [shape: f32[2,2], index: 24, kind: output, shape index: {}]
  %s25 = sld [smem:[#allocation0]]
  $region137: #{tpu_custom_call.1} parent=0
    _
  %s27 = ssub.s32 1, %s25
  %s28 = scalar_select 0, %s27, %s25
  $region1: #{tpu_custom_call.1} parent=0
    #allocation3 [shape = 'u8[1024]{0}', space=vmem, size = 0x400, scoped, tag = 'output window, operand 0, single buffered']
    #allocation4 [shape = 's32[2]{0}', space=sflag, size = 0x8, scoped, tag = 'scoped memory for tpu_custom_call.1']
    %29 = vsyncpa [#allocation4], 0
    loop: start=0, step=1, limit=4
    $region2: #{tpu_custom_call.1} parent=1 // loop_pre_header
      _
    $region3: #{tpu_custom_call.1} parent=1 // loop_header
      %s31 = sphi 0, %s35
      %p32 = scmp.ge.s32.totalorder %s31, 4
      %s39 = sphi 0, %s39
      %s41 = sphi 0, %s39
      %s42 = sphi 0, %s41
      %s56 = sphi 0, %s42
      %s60 = sphi 0, %s60
      %s62 = sphi 0, %s60
      %s63 = sphi 0, %s62
      %s77 = sphi 0, %s63
      %s81 = sphi 0, %s81
      %s83 = sphi 0, %s81
      %s84 = sphi 0, %s83
      %s98 = sphi 0, %s84
      %s102 = sphi 0, %s102
      %s104 = sphi 0, %s102
      %s105 = sphi 0, %s104
      %s119 = sphi 0, %s105
      %s123 = sphi 0, %s123
      %s125 = sphi 0, %s123
      %s126 = sphi 0, %s125
      %s140 = sphi 0, %s126
      %s144 = sphi 0, %s144
      %s146 = sphi 0, %s144
      %s147 = sphi 0, %s146
      %s161 = sphi 0, %s147
      %s165 = sphi 0, %s165
      %s167 = sphi 0, %s165
      %s168 = sphi 0, %s167
      %s182 = sphi 0, %s168
      %s186 = sphi 0, %s186
      %s188 = sphi 0, %s186
      %s189 = sphi 0, %s188
      %s203 = sphi 0, %s189
      %s207 = sphi 0, %s207
      %s209 = sphi 0, %s207
      %s210 = sphi 0, %s209
      %s224 = sphi 0, %s210
      %s228 = sphi 0, %s228
      %s230 = sphi 0, %s228
      %s231 = sphi 0, %s230
      %s245 = sphi 0, %s231
      %s249 = sphi 0, %s249
      %s251 = sphi 0, %s249
      %s252 = sphi 0, %s251
      %s266 = sphi 0, %s252
      %s270 = sphi 0, %s270
      %s272 = sphi 0, %s270
      %s273 = sphi 0, %s272
      %s287 = sphi 0, %s273
      %s293 = sphi 0, %s295
      %s296 = sphi 0, %s293
      %s297 = sphi 0, %s296
      %s313 = sphi 0, %s297
      %s319 = sphi 0, %s321
      %s322 = sphi 0, %s319
      %s323 = sphi 0, %s322
      %s339 = sphi 0, %s323
      %s345 = sphi 0, %s347
      %s348 = sphi 0, %s345
      %s349 = sphi 0, %s348
      %s365 = sphi 0, %s349
      %s371 = sphi 0, %s373
      %s374 = sphi 0, %s371
      %s375 = sphi 0, %s374
      %s391 = sphi 0, %s375
      %s397 = sphi 0, %s399
      %s400 = sphi 0, %s397
      %s401 = sphi 0, %s400
      %s417 = sphi 0, %s401
      %s423 = sphi 0, %s425
      %s426 = sphi 0, %s423
      %s427 = sphi 0, %s426
      %s443 = sphi 0, %s427
      %s449 = sphi 0, %s451
      %s452 = sphi 0, %s449
      %s453 = sphi 0, %s452
      %s469 = sphi 0, %s453
      %s475 = sphi 0, %s477
      %s478 = sphi 0, %s475
      %s479 = sphi 0, %s478
      %s495 = sphi 0, %s479
      %s501 = sphi 0, %s503
      %s504 = sphi 0, %s501
      %s505 = sphi 0, %s504
      %s521 = sphi 0, %s505
      %s527 = sphi 0, %s529
      %s530 = sphi 0, %s527
      %s531 = sphi 0, %s530
      %s547 = sphi 0, %s531
      %s553 = sphi 0, %s555
      %s556 = sphi 0, %s553
      %s557 = sphi 0, %s556
      %s573 = sphi 0, %s557
      %s579 = sphi 0, %s581
      %s582 = sphi 0, %s579
      %s583 = sphi 0, %s582
      %s599 = sphi 0, %s583
      %s603 = sphi 0, %s603
      %s605 = sphi 0, %s603
      %s606 = sphi 0, %s605
      %s620 = sphi 0, %s606
    $region4: #{tpu_custom_call.1} parent=1 // loop_header_branch
      %34 = sbr.rel (%p32) target = $region8
    $region5: #{tpu_custom_call.1} parent=1 // loop_body
      %s36 = ssub.s32 %s31, 1
      %s37 = ssub.s32 %s31, 2
      %s38 = sadd.s32 %s31, 1
      %s40 = sadd.s32 %s39, 1
      %p43 = scmp.eq.s32.totalorder %s31, 1
      %p44 = scmp.ne.s32.totalorder %s39, %s41
      %p45 = scmp.eq.s32.totalorder %s31, 0
      %p46 = por %p44, %p45
      %p47 = scmp.ne.s32.totalorder %s39, %s41
      %p48 = scmp.eq.s32.totalorder %s36, 1
      %p49 = por %p47, %p48
      %p50 = scmp.ne.s32.totalorder %s41, %s42
      %p51 = scmp.eq.s32.totalorder %s36, 0
      %p52 = por %p50, %p51
      %p53 = scmp.ne.s32.totalorder %s41, %s42
      %p54 = scmp.eq.s32.totalorder %s37, 1
      %p55 = por %p53, %p54
      %p57 = scmp.ne.s32.totalorder %s42, %s56
      %p58 = scmp.eq.s32.totalorder %s37, 0
      %p59 = por %p57, %p58
      %s61 = sadd.s32 %s60, 1
      %p64 = scmp.eq.s32.totalorder %s31, 1
      %p65 = scmp.ne.s32.totalorder %s60, %s62
      %p66 = scmp.eq.s32.totalorder %s31, 0
      %p67 = por %p65, %p66
      %p68 = scmp.ne.s32.totalorder %s60, %s62
      %p69 = scmp.eq.s32.totalorder %s36, 1
      %p70 = por %p68, %p69
      %p71 = scmp.ne.s32.totalorder %s62, %s63
      %p72 = scmp.eq.s32.totalorder %s36, 0
      %p73 = por %p71, %p72
      %p74 = scmp.ne.s32.totalorder %s62, %s63
      %p75 = scmp.eq.s32.totalorder %s37, 1
      %p76 = por %p74, %p75
      %p78 = scmp.ne.s32.totalorder %s63, %s77
      %p79 = scmp.eq.s32.totalorder %s37, 0
      %p80 = por %p78, %p79
      %s82 = sadd.s32 %s81, 1
      %p85 = scmp.eq.s32.totalorder %s31, 1
      %p86 = scmp.ne.s32.totalorder %s81, %s83
      %p87 = scmp.eq.s32.totalorder %s31, 0
      %p88 = por %p86, %p87
      %p89 = scmp.ne.s32.totalorder %s81, %s83
      %p90 = scmp.eq.s32.totalorder %s36, 1
      %p91 = por %p89, %p90
      %p92 = scmp.ne.s32.totalorder %s83, %s84
      %p93 = scmp.eq.s32.totalorder %s36, 0
      %p94 = por %p92, %p93
      %p95 = scmp.ne.s32.totalorder %s83, %s84
      %p96 = scmp.eq.s32.totalorder %s37, 1
      %p97 = por %p95, %p96
      %p99 = scmp.ne.s32.totalorder %s84, %s98
      %p100 = scmp.eq.s32.totalorder %s37, 0
      %p101 = por %p99, %p100
      %s103 = sadd.s32 %s102, 1
      %p106 = scmp.eq.s32.totalorder %s31, 1
      %p107 = scmp.ne.s32.totalorder %s102, %s104
      %p108 = scmp.eq.s32.totalorder %s31, 0
      %p109 = por %p107, %p108
      %p110 = scmp.ne.s32.totalorder %s102, %s104
      %p111 = scmp.eq.s32.totalorder %s36, 1
      %p112 = por %p110, %p111
      %p113 = scmp.ne.s32.totalorder %s104, %s105
      %p114 = scmp.eq.s32.totalorder %s36, 0
      %p115 = por %p113, %p114
      %p116 = scmp.ne.s32.totalorder %s104, %s105
      %p117 = scmp.eq.s32.totalorder %s37, 1
      %p118 = por %p116, %p117
      %p120 = scmp.ne.s32.totalorder %s105, %s119
      %p121 = scmp.eq.s32.totalorder %s37, 0
      %p122 = por %p120, %p121
      %s124 = sadd.s32 %s123, 1
      %p127 = scmp.eq.s32.totalorder %s31, 1
      %p128 = scmp.ne.s32.totalorder %s123, %s125
      %p129 = scmp.eq.s32.totalorder %s31, 0
      %p130 = por %p128, %p129
      %p131 = scmp.ne.s32.totalorder %s123, %s125
      %p132 = scmp.eq.s32.totalorder %s36, 1
      %p133 = por %p131, %p132
      %p134 = scmp.ne.s32.totalorder %s125, %s126
      %p135 = scmp.eq.s32.totalorder %s36, 0
      %p136 = por %p134, %p135
      %p137 = scmp.ne.s32.totalorder %s125, %s126
      %p138 = scmp.eq.s32.totalorder %s37, 1
      %p139 = por %p137, %p138
      %p141 = scmp.ne.s32.totalorder %s126, %s140
      %p142 = scmp.eq.s32.totalorder %s37, 0
      %p143 = por %p141, %p142
      %s145 = sadd.s32 %s144, 1
      %p148 = scmp.eq.s32.totalorder %s31, 1
      %p149 = scmp.ne.s32.totalorder %s144, %s146
      %p150 = scmp.eq.s32.totalorder %s31, 0
      %p151 = por %p149, %p150
      %p152 = scmp.ne.s32.totalorder %s144, %s146
      %p153 = scmp.eq.s32.totalorder %s36, 1
      %p154 = por %p152, %p153
      %p155 = scmp.ne.s32.totalorder %s146, %s147
      %p156 = scmp.eq.s32.totalorder %s36, 0
      %p157 = por %p155, %p156
      %p158 = scmp.ne.s32.totalorder %s146, %s147
      %p159 = scmp.eq.s32.totalorder %s37, 1
      %p160 = por %p158, %p159
      %p162 = scmp.ne.s32.totalorder %s147, %s161
      %p163 = scmp.eq.s32.totalorder %s37, 0
      %p164 = por %p162, %p163
      %s166 = sadd.s32 %s165, 1
      %p169 = scmp.eq.s32.totalorder %s31, 1
      %p170 = scmp.ne.s32.totalorder %s165, %s167
      %p171 = scmp.eq.s32.totalorder %s31, 0
      %p172 = por %p170, %p171
      %p173 = scmp.ne.s32.totalorder %s165, %s167
      %p174 = scmp.eq.s32.totalorder %s36, 1
      %p175 = por %p173, %p174
      %p176 = scmp.ne.s32.totalorder %s167, %s168
      %p177 = scmp.eq.s32.totalorder %s36, 0
      %p178 = por %p176, %p177
      %p179 = scmp.ne.s32.totalorder %s167, %s168
      %p180 = scmp.eq.s32.totalorder %s37, 1
      %p181 = por %p179, %p180
      %p183 = scmp.ne.s32.totalorder %s168, %s182
      %p184 = scmp.eq.s32.totalorder %s37, 0
      %p185 = por %p183, %p184
      %s187 = sadd.s32 %s186, 1
      %p190 = scmp.eq.s32.totalorder %s31, 1
      %p191 = scmp.ne.s32.totalorder %s186, %s188
      %p192 = scmp.eq.s32.totalorder %s31, 0
      %p193 = por %p191, %p192
      %p194 = scmp.ne.s32.totalorder %s186, %s188
      %p195 = scmp.eq.s32.totalorder %s36, 1
      %p196 = por %p194, %p195
      %p197 = scmp.ne.s32.totalorder %s188, %s189
      %p198 = scmp.eq.s32.totalorder %s36, 0
      %p199 = por %p197, %p198
      %p200 = scmp.ne.s32.totalorder %s188, %s189
      %p201 = scmp.eq.s32.totalorder %s37, 1
      %p202 = por %p200, %p201
      %p204 = scmp.ne.s32.totalorder %s189, %s203
      %p205 = scmp.eq.s32.totalorder %s37, 0
      %p206 = por %p204, %p205
      %s208 = sadd.s32 %s207, 1
      %p211 = scmp.eq.s32.totalorder %s31, 1
      %p212 = scmp.ne.s32.totalorder %s207, %s209
      %p213 = scmp.eq.s32.totalorder %s31, 0
      %p214 = por %p212, %p213
      %p215 = scmp.ne.s32.totalorder %s207, %s209
      %p216 = scmp.eq.s32.totalorder %s36, 1
      %p217 = por %p215, %p216
      %p218 = scmp.ne.s32.totalorder %s209, %s210
      %p219 = scmp.eq.s32.totalorder %s36, 0
      %p220 = por %p218, %p219
      %p221 = scmp.ne.s32.totalorder %s209, %s210
      %p222 = scmp.eq.s32.totalorder %s37, 1
      %p223 = por %p221, %p222
      %p225 = scmp.ne.s32.totalorder %s210, %s224
      %p226 = scmp.eq.s32.totalorder %s37, 0
      %p227 = por %p225, %p226
      %s229 = sadd.s32 %s228, 1
      %p232 = scmp.eq.s32.totalorder %s31, 1
      %p233 = scmp.ne.s32.totalorder %s228, %s230
      %p234 = scmp.eq.s32.totalorder %s31, 0
      %p235 = por %p233, %p234
      %p236 = scmp.ne.s32.totalorder %s228, %s230
      %p237 = scmp.eq.s32.totalorder %s36, 1
      %p238 = por %p236, %p237
      %p239 = scmp.ne.s32.totalorder %s230, %s231
      %p240 = scmp.eq.s32.totalorder %s36, 0
      %p241 = por %p239, %p240
      %p242 = scmp.ne.s32.totalorder %s230, %s231
      %p243 = scmp.eq.s32.totalorder %s37, 1
      %p244 = por %p242, %p243
      %p246 = scmp.ne.s32.totalorder %s231, %s245
      %p247 = scmp.eq.s32.totalorder %s37, 0
      %p248 = por %p246, %p247
      %s250 = sadd.s32 %s249, 1
      %p253 = scmp.eq.s32.totalorder %s31, 1
      %p254 = scmp.ne.s32.totalorder %s249, %s251
      %p255 = scmp.eq.s32.totalorder %s31, 0
      %p256 = por %p254, %p255
      %p257 = scmp.ne.s32.totalorder %s249, %s251
      %p258 = scmp.eq.s32.totalorder %s36, 1
      %p259 = por %p257, %p258
      %p260 = scmp.ne.s32.totalorder %s251, %s252
      %p261 = scmp.eq.s32.totalorder %s36, 0
      %p262 = por %p260, %p261
      %p263 = scmp.ne.s32.totalorder %s251, %s252
      %p264 = scmp.eq.s32.totalorder %s37, 1
      %p265 = por %p263, %p264
      %p267 = scmp.ne.s32.totalorder %s252, %s266
      %p268 = scmp.eq.s32.totalorder %s37, 0
      %p269 = por %p267, %p268
      %s271 = sadd.s32 %s270, 1
      %p274 = scmp.eq.s32.totalorder %s31, 1
      %p275 = scmp.ne.s32.totalorder %s270, %s272
      %p276 = scmp.eq.s32.totalorder %s31, 0
      %p277 = por %p275, %p276
      %p278 = scmp.ne.s32.totalorder %s270, %s272
      %p279 = scmp.eq.s32.totalorder %s36, 1
      %p280 = por %p278, %p279
      %p281 = scmp.ne.s32.totalorder %s272, %s273
      %p282 = scmp.eq.s32.totalorder %s36, 0
      %p283 = por %p281, %p282
      %p284 = scmp.ne.s32.totalorder %s272, %s273
      %p285 = scmp.eq.s32.totalorder %s37, 1
      %p286 = por %p284, %p285
      %p288 = scmp.ne.s32.totalorder %s273, %s287
      %p289 = scmp.eq.s32.totalorder %s37, 0
      %p290 = por %p288, %p289
      %s291 = ssub.s32 %s31, %s38
      %p292 = scmp.eq.s32.totalorder %s291, 0
      %s294 = sadd.s32 %s293, 1
      %s295 = scalar_select %p292, %s293, %s294
      %p298 = pneg %p292
      %p299 = scmp.eq.s32.totalorder %s31, 1
      %p300 = por %p298, %p299
      %p301 = scmp.ne.s32.totalorder %s293, %s296
      %p302 = scmp.eq.s32.totalorder %s31, 0
      %p303 = por %p301, %p302
      %p304 = scmp.ne.s32.totalorder %s293, %s296
      %p305 = scmp.eq.s32.totalorder %s36, 1
      %p306 = por %p304, %p305
      %p307 = scmp.ne.s32.totalorder %s296, %s297
      %p308 = scmp.eq.s32.totalorder %s36, 0
      %p309 = por %p307, %p308
      %p310 = scmp.ne.s32.totalorder %s296, %s297
      %p311 = scmp.eq.s32.totalorder %s37, 1
      %p312 = por %p310, %p311
      %p314 = scmp.ne.s32.totalorder %s297, %s313
      %p315 = scmp.eq.s32.totalorder %s37, 0
      %p316 = por %p314, %p315
      %s317 = ssub.s32 %s31, %s38
      %p318 = scmp.eq.s32.totalorder %s317, 0
      %s320 = sadd.s32 %s319, 1
      %s321 = scalar_select %p318, %s319, %s320
      %p324 = pneg %p318
      %p325 = scmp.eq.s32.totalorder %s31, 1
      %p326 = por %p324, %p325
      %p327 = scmp.ne.s32.totalorder %s319, %s322
      %p328 = scmp.eq.s32.totalorder %s31, 0
      %p329 = por %p327, %p328
      %p330 = scmp.ne.s32.totalorder %s319, %s322
      %p331 = scmp.eq.s32.totalorder %s36, 1
      %p332 = por %p330, %p331
      %p333 = scmp.ne.s32.totalorder %s322, %s323
      %p334 = scmp.eq.s32.totalorder %s36, 0
      %p335 = por %p333, %p334
      %p336 = scmp.ne.s32.totalorder %s322, %s323
      %p337 = scmp.eq.s32.totalorder %s37, 1
      %p338 = por %p336, %p337
      %p340 = scmp.ne.s32.totalorder %s323, %s339
      %p341 = scmp.eq.s32.totalorder %s37, 0
      %p342 = por %p340, %p341
      %s343 = ssub.s32 %s31, %s38
      %p344 = scmp.eq.s32.totalorder %s343, 0
      %s346 = sadd.s32 %s345, 1
      %s347 = scalar_select %p344, %s345, %s346
      %p350 = pneg %p344
      %p351 = scmp.eq.s32.totalorder %s31, 1
      %p352 = por %p350, %p351
      %p353 = scmp.ne.s32.totalorder %s345, %s348
      %p354 = scmp.eq.s32.totalorder %s31, 0
      %p355 = por %p353, %p354
      %p356 = scmp.ne.s32.totalorder %s345, %s348
      %p357 = scmp.eq.s32.totalorder %s36, 1
      %p358 = por %p356, %p357
      %p359 = scmp.ne.s32.totalorder %s348, %s349
      %p360 = scmp.eq.s32.totalorder %s36, 0
      %p361 = por %p359, %p360
      %p362 = scmp.ne.s32.totalorder %s348, %s349
      %p363 = scmp.eq.s32.totalorder %s37, 1
      %p364 = por %p362, %p363
      %p366 = scmp.ne.s32.totalorder %s349, %s365
      %p367 = scmp.eq.s32.totalorder %s37, 0
      %p368 = por %p366, %p367
      %s369 = ssub.s32 %s31, %s38
      %p370 = scmp.eq.s32.totalorder %s369, 0
      %s372 = sadd.s32 %s371, 1
      %s373 = scalar_select %p370, %s371, %s372
      %p376 = pneg %p370
      %p377 = scmp.eq.s32.totalorder %s31, 1
      %p378 = por %p376, %p377
      %p379 = scmp.ne.s32.totalorder %s371, %s374
      %p380 = scmp.eq.s32.totalorder %s31, 0
      %p381 = por %p379, %p380
      %p382 = scmp.ne.s32.totalorder %s371, %s374
      %p383 = scmp.eq.s32.totalorder %s36, 1
      %p384 = por %p382, %p383
      %p385 = scmp.ne.s32.totalorder %s374, %s375
      %p386 = scmp.eq.s32.totalorder %s36, 0
      %p387 = por %p385, %p386
      %p388 = scmp.ne.s32.totalorder %s374, %s375
      %p389 = scmp.eq.s32.totalorder %s37, 1
      %p390 = por %p388, %p389
      %p392 = scmp.ne.s32.totalorder %s375, %s391
      %p393 = scmp.eq.s32.totalorder %s37, 0
      %p394 = por %p392, %p393
      %s395 = ssub.s32 %s31, %s38
      %p396 = scmp.eq.s32.totalorder %s395, 0
      %s398 = sadd.s32 %s397, 1
      %s399 = scalar_select %p396, %s397, %s398
      %p402 = pneg %p396
      %p403 = scmp.eq.s32.totalorder %s31, 1
      %p404 = por %p402, %p403
      %p405 = scmp.ne.s32.totalorder %s397, %s400
      %p406 = scmp.eq.s32.totalorder %s31, 0
      %p407 = por %p405, %p406
      %p408 = scmp.ne.s32.totalorder %s397, %s400
      %p409 = scmp.eq.s32.totalorder %s36, 1
      %p410 = por %p408, %p409
      %p411 = scmp.ne.s32.totalorder %s400, %s401
      %p412 = scmp.eq.s32.totalorder %s36, 0
      %p413 = por %p411, %p412
      %p414 = scmp.ne.s32.totalorder %s400, %s401
      %p415 = scmp.eq.s32.totalorder %s37, 1
      %p416 = por %p414, %p415
      %p418 = scmp.ne.s32.totalorder %s401, %s417
      %p419 = scmp.eq.s32.totalorder %s37, 0
      %p420 = por %p418, %p419
      %s421 = ssub.s32 %s31, %s38
      %p422 = scmp.eq.s32.totalorder %s421, 0
      %s424 = sadd.s32 %s423, 1
      %s425 = scalar_select %p422, %s423, %s424
      %p428 = pneg %p422
      %p429 = scmp.eq.s32.totalorder %s31, 1
      %p430 = por %p428, %p429
      %p431 = scmp.ne.s32.totalorder %s423, %s426
      %p432 = scmp.eq.s32.totalorder %s31, 0
      %p433 = por %p431, %p432
      %p434 = scmp.ne.s32.totalorder %s423, %s426
      %p435 = scmp.eq.s32.totalorder %s36, 1
      %p436 = por %p434, %p435
      %p437 = scmp.ne.s32.totalorder %s426, %s427
      %p438 = scmp.eq.s32.totalorder %s36, 0
      %p439 = por %p437, %p438
      %p440 = scmp.ne.s32.totalorder %s426, %s427
      %p441 = scmp.eq.s32.totalorder %s37, 1
      %p442 = por %p440, %p441
      %p444 = scmp.ne.s32.totalorder %s427, %s443
      %p445 = scmp.eq.s32.totalorder %s37, 0
      %p446 = por %p444, %p445
      %s447 = ssub.s32 %s31, %s38
      %p448 = scmp.eq.s32.totalorder %s447, 0
      %s450 = sadd.s32 %s449, 1
      %s451 = scalar_select %p448, %s449, %s450
      %p454 = pneg %p448
      %p455 = scmp.eq.s32.totalorder %s31, 1
      %p456 = por %p454, %p455
      %p457 = scmp.ne.s32.totalorder %s449, %s452
      %p458 = scmp.eq.s32.totalorder %s31, 0
      %p459 = por %p457, %p458
      %p460 = scmp.ne.s32.totalorder %s449, %s452
      %p461 = scmp.eq.s32.totalorder %s36, 1
      %p462 = por %p460, %p461
      %p463 = scmp.ne.s32.totalorder %s452, %s453
      %p464 = scmp.eq.s32.totalorder %s36, 0
      %p465 = por %p463, %p464
      %p466 = scmp.ne.s32.totalorder %s452, %s453
      %p467 = scmp.eq.s32.totalorder %s37, 1
      %p468 = por %p466, %p467
      %p470 = scmp.ne.s32.totalorder %s453, %s469
      %p471 = scmp.eq.s32.totalorder %s37, 0
      %p472 = por %p470, %p471
      %s473 = ssub.s32 %s31, %s38
      %p474 = scmp.eq.s32.totalorder %s473, 0
      %s476 = sadd.s32 %s475, 1
      %s477 = scalar_select %p474, %s475, %s476
      %p480 = pneg %p474
      %p481 = scmp.eq.s32.totalorder %s31, 1
      %p482 = por %p480, %p481
      %p483 = scmp.ne.s32.totalorder %s475, %s478
      %p484 = scmp.eq.s32.totalorder %s31, 0
      %p485 = por %p483, %p484
      %p486 = scmp.ne.s32.totalorder %s475, %s478
      %p487 = scmp.eq.s32.totalorder %s36, 1
      %p488 = por %p486, %p487
      %p489 = scmp.ne.s32.totalorder %s478, %s479
      %p490 = scmp.eq.s32.totalorder %s36, 0
      %p491 = por %p489, %p490
      %p492 = scmp.ne.s32.totalorder %s478, %s479
      %p493 = scmp.eq.s32.totalorder %s37, 1
      %p494 = por %p492, %p493
      %p496 = scmp.ne.s32.totalorder %s479, %s495
      %p497 = scmp.eq.s32.totalorder %s37, 0
      %p498 = por %p496, %p497
      %s499 = ssub.s32 %s31, %s38
      %p500 = scmp.eq.s32.totalorder %s499, 0
      %s502 = sadd.s32 %s501, 1
      %s503 = scalar_select %p500, %s501, %s502
      %p506 = pneg %p500
      %p507 = scmp.eq.s32.totalorder %s31, 1
      %p508 = por %p506, %p507
      %p509 = scmp.ne.s32.totalorder %s501, %s504
      %p510 = scmp.eq.s32.totalorder %s31, 0
      %p511 = por %p509, %p510
      %p512 = scmp.ne.s32.totalorder %s501, %s504
      %p513 = scmp.eq.s32.totalorder %s36, 1
      %p514 = por %p512, %p513
      %p515 = scmp.ne.s32.totalorder %s504, %s505
      %p516 = scmp.eq.s32.totalorder %s36, 0
      %p517 = por %p515, %p516
      %p518 = scmp.ne.s32.totalorder %s504, %s505
      %p519 = scmp.eq.s32.totalorder %s37, 1
      %p520 = por %p518, %p519
      %p522 = scmp.ne.s32.totalorder %s505, %s521
      %p523 = scmp.eq.s32.totalorder %s37, 0
      %p524 = por %p522, %p523
      %s525 = ssub.s32 %s31, %s38
      %p526 = scmp.eq.s32.totalorder %s525, 0
      %s528 = sadd.s32 %s527, 1
      %s529 = scalar_select %p526, %s527, %s528
      %p532 = pneg %p526
      %p533 = scmp.eq.s32.totalorder %s31, 1
      %p534 = por %p532, %p533
      %p535 = scmp.ne.s32.totalorder %s527, %s530
      %p536 = scmp.eq.s32.totalorder %s31, 0
      %p537 = por %p535, %p536
      %p538 = scmp.ne.s32.totalorder %s527, %s530
      %p539 = scmp.eq.s32.totalorder %s36, 1
      %p540 = por %p538, %p539
      %p541 = scmp.ne.s32.totalorder %s530, %s531
      %p542 = scmp.eq.s32.totalorder %s36, 0
      %p543 = por %p541, %p542
      %p544 = scmp.ne.s32.totalorder %s530, %s531
      %p545 = scmp.eq.s32.totalorder %s37, 1
      %p546 = por %p544, %p545
      %p548 = scmp.ne.s32.totalorder %s531, %s547
      %p549 = scmp.eq.s32.totalorder %s37, 0
      %p550 = por %p548, %p549
      %s551 = ssub.s32 %s31, %s38
      %p552 = scmp.eq.s32.totalorder %s551, 0
      %s554 = sadd.s32 %s553, 1
      %s555 = scalar_select %p552, %s553, %s554
      %p558 = pneg %p552
      %p559 = scmp.eq.s32.totalorder %s31, 1
      %p560 = por %p558, %p559
      %p561 = scmp.ne.s32.totalorder %s553, %s556
      %p562 = scmp.eq.s32.totalorder %s31, 0
      %p563 = por %p561, %p562
      %p564 = scmp.ne.s32.totalorder %s553, %s556
      %p565 = scmp.eq.s32.totalorder %s36, 1
      %p566 = por %p564, %p565
      %p567 = scmp.ne.s32.totalorder %s556, %s557
      %p568 = scmp.eq.s32.totalorder %s36, 0
      %p569 = por %p567, %p568
      %p570 = scmp.ne.s32.totalorder %s556, %s557
      %p571 = scmp.eq.s32.totalorder %s37, 1
      %p572 = por %p570, %p571
      %p574 = scmp.ne.s32.totalorder %s557, %s573
      %p575 = scmp.eq.s32.totalorder %s37, 0
      %p576 = por %p574, %p575
      %s577 = ssub.s32 %s31, %s38
      %p578 = scmp.eq.s32.totalorder %s577, 0
      %s580 = sadd.s32 %s579, 1
      %s581 = scalar_select %p578, %s579, %s580
      %p584 = pneg %p578
      %p585 = scmp.eq.s32.totalorder %s31, 1
      %p586 = por %p584, %p585
      %p587 = scmp.ne.s32.totalorder %s579, %s582
      %p588 = scmp.eq.s32.totalorder %s31, 0
      %p589 = por %p587, %p588
      %p590 = scmp.ne.s32.totalorder %s579, %s582
      %p591 = scmp.eq.s32.totalorder %s36, 1
      %p592 = por %p590, %p591
      %p593 = scmp.ne.s32.totalorder %s582, %s583
      %p594 = scmp.eq.s32.totalorder %s36, 0
      %p595 = por %p593, %p594
      %p596 = scmp.ne.s32.totalorder %s582, %s583
      %p597 = scmp.eq.s32.totalorder %s37, 1
      %p598 = por %p596, %p597
      %p600 = scmp.ne.s32.totalorder %s583, %s599
      %p601 = scmp.eq.s32.totalorder %s37, 0
      %p602 = por %p600, %p601
      %s604 = sadd.s32 %s603, 1
      %p607 = scmp.eq.s32.totalorder %s31, 1
      %p608 = scmp.ne.s32.totalorder %s603, %s605
      %p609 = scmp.eq.s32.totalorder %s31, 0
      %p610 = por %p608, %p609
      %p611 = scmp.ne.s32.totalorder %s603, %s605
      %p612 = scmp.eq.s32.totalorder %s36, 1
      %p613 = por %p611, %p612
      %p614 = scmp.ne.s32.totalorder %s605, %s606
      %p615 = scmp.eq.s32.totalorder %s36, 0
      %p616 = por %p614, %p615
      %p617 = scmp.ne.s32.totalorder %s605, %s606
      %p618 = scmp.eq.s32.totalorder %s37, 1
      %p619 = por %p617, %p618
      %p621 = scmp.ne.s32.totalorder %s606, %s620
      %p622 = scmp.eq.s32.totalorder %s37, 0
      %p623 = por %p621, %p622
      %p624 = scmp.le.s32.totalorder 1, %s31
      %p625 = scmp.lt.s32.totalorder %s31, 3
      %p626 = pnand %p624, %p625
      %p627 = pneg %p626
      // Predicated region
      $region9: #{tpu_custom_call.1} parent=5 // pred_check
        _
      $region10: #{tpu_custom_call.1} parent=5 // pred_check_branch
        %629 = sbr.rel (%p626) target = $region12
      $region11: #{tpu_custom_call.1} parent=5 // pred_region
        %s630 = ssub.s32 %s31, 1
        // Predicated region
        $region13: #{tpu_custom_call.1} parent=11 // pred_check
          %p631 = pneg %p52
        $region14: #{tpu_custom_call.1} parent=11 // pred_check_branch
          %633 = sbr.rel (%p631) target = $region16
        $region15: #{tpu_custom_call.1} parent=11 // pred_region
          _
        $region16: #{tpu_custom_call.1} parent=11 // pred_fallthru
          _
        // Predicated region
        $region17: #{tpu_custom_call.1} parent=11 // pred_check
          %p634 = pneg %p73
        $region18: #{tpu_custom_call.1} parent=11 // pred_check_branch
          %636 = sbr.rel (%p634) target = $region20
        $region19: #{tpu_custom_call.1} parent=11 // pred_region
          _
        $region20: #{tpu_custom_call.1} parent=11 // pred_fallthru
          _
        // Predicated region
        $region21: #{tpu_custom_call.1} parent=11 // pred_check
          %p637 = pneg %p94
        $region22: #{tpu_custom_call.1} parent=11 // pred_check_branch
          %639 = sbr.rel (%p637) target = $region24
        $region23: #{tpu_custom_call.1} parent=11 // pred_region
          _
        $region24: #{tpu_custom_call.1} parent=11 // pred_fallthru
          _
        // Predicated region
        $region25: #{tpu_custom_call.1} parent=11 // pred_check
          %p640 = pneg %p115
        $region26: #{tpu_custom_call.1} parent=11 // pred_check_branch
          %642 = sbr.rel (%p640) target = $region28
        $region27: #{tpu_custom_call.1} parent=11 // pred_region
          _
        $region28: #{tpu_custom_call.1} parent=11 // pred_fallthru
          _
        // Predicated region
        $region29: #{tpu_custom_call.1} parent=11 // pred_check
          %p643 = pneg %p136
        $region30: #{tpu_custom_call.1} parent=11 // pred_check_branch
          %645 = sbr.rel (%p643) target = $region32
        $region31: #{tpu_custom_call.1} parent=11 // pred_region
          _
        $region32: #{tpu_custom_call.1} parent=11 // pred_fallthru
          _
        // Predicated region
        $region33: #{tpu_custom_call.1} parent=11 // pred_check
          %p646 = pneg %p157
        $region34: #{tpu_custom_call.1} parent=11 // pred_check_branch
          %648 = sbr.rel (%p646) target = $region36
        $region35: #{tpu_custom_call.1} parent=11 // pred_region
          _
        $region36: #{tpu_custom_call.1} parent=11 // pred_fallthru
          _
        // Predicated region
        $region37: #{tpu_custom_call.1} parent=11 // pred_check
          %p649 = pneg %p178
        $region38: #{tpu_custom_call.1} parent=11 // pred_check_branch
          %651 = sbr.rel (%p649) target = $region40
        $region39: #{tpu_custom_call.1} parent=11 // pred_region
          _
        $region40: #{tpu_custom_call.1} parent=11 // pred_fallthru
          _
        // Predicated region
        $region41: #{tpu_custom_call.1} parent=11 // pred_check
          %p652 = pneg %p199
        $region42: #{tpu_custom_call.1} parent=11 // pred_check_branch
          %654 = sbr.rel (%p652) target = $region44
        $region43: #{tpu_custom_call.1} parent=11 // pred_region
          _
        $region44: #{tpu_custom_call.1} parent=11 // pred_fallthru
          _
        // Predicated region
        $region45: #{tpu_custom_call.1} parent=11 // pred_check
          %p655 = pneg %p220
        $region46: #{tpu_custom_call.1} parent=11 // pred_check_branch
          %657 = sbr.rel (%p655) target = $region48
        $region47: #{tpu_custom_call.1} parent=11 // pred_region
          _
        $region48: #{tpu_custom_call.1} parent=11 // pred_fallthru
          _
        // Predicated region
        $region49: #{tpu_custom_call.1} parent=11 // pred_check
          %p658 = pneg %p241
        $region50: #{tpu_custom_call.1} parent=11 // pred_check_branch
          %660 = sbr.rel (%p658) target = $region52
        $region51: #{tpu_custom_call.1} parent=11 // pred_region
          _
        $region52: #{tpu_custom_call.1} parent=11 // pred_fallthru
          _
        // Predicated region
        $region53: #{tpu_custom_call.1} parent=11 // pred_check
          %p661 = pneg %p262
        $region54: #{tpu_custom_call.1} parent=11 // pred_check_branch
          %663 = sbr.rel (%p661) target = $region56
        $region55: #{tpu_custom_call.1} parent=11 // pred_region
          _
        $region56: #{tpu_custom_call.1} parent=11 // pred_fallthru
          _
        // Predicated region
        $region57: #{tpu_custom_call.1} parent=11 // pred_check
          %p664 = pneg %p283
        $region58: #{tpu_custom_call.1} parent=11 // pred_check_branch
          %666 = sbr.rel (%p664) target = $region60
        $region59: #{tpu_custom_call.1} parent=11 // pred_region
          _
        $region60: #{tpu_custom_call.1} parent=11 // pred_fallthru
          _
      $region12: #{tpu_custom_call.1} parent=5 // pred_fallthru
        _
      %p667 = scmp.lt.s32.totalorder %s31, 2
      // Predicated region
      $region61: #{tpu_custom_call.1} parent=5 // pred_check
        %p668 = pneg %p667
      $region62: #{tpu_custom_call.1} parent=5 // pred_check_branch
        %670 = sbr.rel (%p668) target = $region64
      $region63: #{tpu_custom_call.1} parent=5 // pred_region
        // Predicated region
        $region65: #{tpu_custom_call.1} parent=63 // pred_check
          %p671 = pneg %p303
        $region66: #{tpu_custom_call.1} parent=63 // pred_check_branch
          %673 = sbr.rel (%p671) target = $region68
        $region67: #{tpu_custom_call.1} parent=63 // pred_region
          %p674 = scmp.lt.s32.totalorder %s31, 1
          %s675 = scalar_select %p674, %s31, 1
          %s676 = scalar_lea.vmem %s12, %s675
        $region68: #{tpu_custom_call.1} parent=63 // pred_fallthru
          _
        // Predicated region
        $region69: #{tpu_custom_call.1} parent=63 // pred_check
          %p677 = pneg %p329
        $region70: #{tpu_custom_call.1} parent=63 // pred_check_branch
          %679 = sbr.rel (%p677) target = $region72
        $region71: #{tpu_custom_call.1} parent=63 // pred_region
          %p680 = scmp.lt.s32.totalorder %s31, 1
          %s681 = scalar_select %p680, %s31, 1
          %s682 = scalar_lea.vmem %s13, %s681
        $region72: #{tpu_custom_call.1} parent=63 // pred_fallthru
          _
        // Predicated region
        $region73: #{tpu_custom_call.1} parent=63 // pred_check
          %p683 = pneg %p355
        $region74: #{tpu_custom_call.1} parent=63 // pred_check_branch
          %685 = sbr.rel (%p683) target = $region76
        $region75: #{tpu_custom_call.1} parent=63 // pred_region
          %p686 = scmp.lt.s32.totalorder %s31, 1
          %s687 = scalar_select %p686, %s31, 1
          %s688 = smul.addr %s687, 4
          %s689 = smul.addr %s688, 4
          %s690 = scalar_lea.vmem %s14, %s689
        $region76: #{tpu_custom_call.1} parent=63 // pred_fallthru
          _
        // Predicated region
        $region77: #{tpu_custom_call.1} parent=63 // pred_check
          %p691 = pneg %p381
        $region78: #{tpu_custom_call.1} parent=63 // pred_check_branch
          %693 = sbr.rel (%p691) target = $region80
        $region79: #{tpu_custom_call.1} parent=63 // pred_region
          %p694 = scmp.lt.s32.totalorder %s31, 1
          %s695 = scalar_select %p694, %s31, 1
          %s696 = scalar_lea.vmem %s15, %s695
        $region80: #{tpu_custom_call.1} parent=63 // pred_fallthru
          _
        // Predicated region
        $region81: #{tpu_custom_call.1} parent=63 // pred_check
          %p697 = pneg %p407
        $region82: #{tpu_custom_call.1} parent=63 // pred_check_branch
          %699 = sbr.rel (%p697) target = $region84
        $region83: #{tpu_custom_call.1} parent=63 // pred_region
          %p700 = scmp.lt.s32.totalorder %s31, 1
          %s701 = scalar_select %p700, %s31, 1
          %s702 = smul.addr %s701, 4
          %s703 = smul.addr %s702, 4
          %s704 = scalar_lea.vmem %s16, %s703
        $region84: #{tpu_custom_call.1} parent=63 // pred_fallthru
          _
        // Predicated region
        $region85: #{tpu_custom_call.1} parent=63 // pred_check
          %p705 = pneg %p433
        $region86: #{tpu_custom_call.1} parent=63 // pred_check_branch
          %707 = sbr.rel (%p705) target = $region88
        $region87: #{tpu_custom_call.1} parent=63 // pred_region
          %p708 = scmp.lt.s32.totalorder %s31, 1
          %s709 = scalar_select %p708, %s31, 1
          %s710 = scalar_lea.vmem %s17, %s709
        $region88: #{tpu_custom_call.1} parent=63 // pred_fallthru
          _
        // Predicated region
        $region89: #{tpu_custom_call.1} parent=63 // pred_check
          %p711 = pneg %p459
        $region90: #{tpu_custom_call.1} parent=63 // pred_check_branch
          %713 = sbr.rel (%p711) target = $region92
        $region91: #{tpu_custom_call.1} parent=63 // pred_region
          %p714 = scmp.lt.s32.totalorder %s31, 1
          %s715 = scalar_select %p714, %s31, 1
          %s716 = scalar_lea.vmem %s18, %s715
        $region92: #{tpu_custom_call.1} parent=63 // pred_fallthru
          _
        // Predicated region
        $region93: #{tpu_custom_call.1} parent=63 // pred_check
          %p717 = pneg %p485
        $region94: #{tpu_custom_call.1} parent=63 // pred_check_branch
          %719 = sbr.rel (%p717) target = $region96
        $region95: #{tpu_custom_call.1} parent=63 // pred_region
          %p720 = scmp.lt.s32.totalorder %s31, 1
          %s721 = scalar_select %p720, %s31, 1
          %s722 = scalar_lea.vmem %s19, %s721
        $region96: #{tpu_custom_call.1} parent=63 // pred_fallthru
          _
        // Predicated region
        $region97: #{tpu_custom_call.1} parent=63 // pred_check
          %p723 = pneg %p511
        $region98: #{tpu_custom_call.1} parent=63 // pred_check_branch
          %725 = sbr.rel (%p723) target = $region100
        $region99: #{tpu_custom_call.1} parent=63 // pred_region
          %p726 = scmp.lt.s32.totalorder %s31, 1
          %s727 = scalar_select %p726, %s31, 1
          %s728 = smul.addr %s727, 4
          %s729 = smul.addr %s728, 4
          %s730 = scalar_lea.vmem %s20, %s729
        $region100: #{tpu_custom_call.1} parent=63 // pred_fallthru
          _
        // Predicated region
        $region101: #{tpu_custom_call.1} parent=63 // pred_check
          %p731 = pneg %p537
        $region102: #{tpu_custom_call.1} parent=63 // pred_check_branch
          %733 = sbr.rel (%p731) target = $region104
        $region103: #{tpu_custom_call.1} parent=63 // pred_region
          %p734 = scmp.lt.s32.totalorder %s31, 1
          %s735 = scalar_select %p734, %s31, 1
          %s736 = scalar_lea.vmem %s21, %s735
        $region104: #{tpu_custom_call.1} parent=63 // pred_fallthru
          _
        // Predicated region
        $region105: #{tpu_custom_call.1} parent=63 // pred_check
          %p737 = pneg %p563
        $region106: #{tpu_custom_call.1} parent=63 // pred_check_branch
          %739 = sbr.rel (%p737) target = $region108
        $region107: #{tpu_custom_call.1} parent=63 // pred_region
          %p740 = scmp.lt.s32.totalorder %s31, 1
          %s741 = scalar_select %p740, %s31, 1
          %s742 = smul.addr %s741, 16
          %s743 = smul.addr %s742, 4
          %s744 = scalar_lea.vmem %s22, %s743
        $region108: #{tpu_custom_call.1} parent=63 // pred_fallthru
          _
        // Predicated region
        $region109: #{tpu_custom_call.1} parent=63 // pred_check
          %p745 = pneg %p589
        $region110: #{tpu_custom_call.1} parent=63 // pred_check_branch
          %747 = sbr.rel (%p745) target = $region112
        $region111: #{tpu_custom_call.1} parent=63 // pred_region
          %p748 = scmp.lt.s32.totalorder %s31, 1
          %s749 = scalar_select %p748, %s31, 1
          %s750 = scalar_lea.vmem %s23, %s749
        $region112: #{tpu_custom_call.1} parent=63 // pred_fallthru
          _
      $region64: #{tpu_custom_call.1} parent=5 // pred_fallthru
        _
      %p751 = scmp.le.s32.totalorder 1, %s31
      %p752 = scmp.lt.s32.totalorder %s31, 3
      %p753 = pnand %p751, %p752
      %p754 = pneg %p753
      // Predicated region
      $region113: #{tpu_custom_call.1} parent=5 // pred_check
        _
      $region114: #{tpu_custom_call.1} parent=5 // pred_check_branch
        %756 = sbr.rel (%p753) target = $region116
      $region115: #{tpu_custom_call.1} parent=5 // pred_region
        %s757 = ssub.s32 %s31, 1
        %p758 = pneg %p52
        %p759 = pneg %p49
        %p760 = pneg %p73
        %p761 = pneg %p70
        %p762 = pneg %p94
        %p763 = pneg %p91
        %p764 = pneg %p115
        %p765 = pneg %p112
        %p766 = pneg %p136
        %p767 = pneg %p133
        %p768 = pneg %p157
        %p769 = pneg %p154
        %p770 = pneg %p178
        %p771 = pneg %p175
        %p772 = pneg %p199
        %p773 = pneg %p196
        %p774 = pneg %p220
        %p775 = pneg %p217
        %p776 = pneg %p241
        %p777 = pneg %p238
        %p778 = pneg %p262
        %p779 = pneg %p259
        %p780 = pneg %p283
        %p781 = pneg %p280
        %p782 = scmp.lt.s32.totalorder %s36, 1
        %s783 = scalar_select %p782, %s36, 1
        %s784 = scalar_lea.vmem %s12, %s783
        %p785 = pneg %p309
        %p786 = pneg %p306
        %p787 = scmp.lt.s32.totalorder %s36, 1
        %s788 = scalar_select %p787, %s36, 1
        %s789 = scalar_lea.vmem %s13, %s788
        %p790 = pneg %p335
        %p791 = pneg %p332
        %p792 = scmp.lt.s32.totalorder %s36, 1
        %s793 = scalar_select %p792, %s36, 1
        %s794 = smul.addr %s793, 4
        %s795 = smul.addr %s794, 4
        %s796 = scalar_lea.vmem %s14, %s795
        %p797 = pneg %p361
        %p798 = pneg %p358
        %p799 = scmp.lt.s32.totalorder %s36, 1
        %s800 = scalar_select %p799, %s36, 1
        %s801 = scalar_lea.vmem %s15, %s800
        %p802 = pneg %p387
        %p803 = pneg %p384
        %p804 = scmp.lt.s32.totalorder %s36, 1
        %s805 = scalar_select %p804, %s36, 1
        %s806 = smul.addr %s805, 4
        %s807 = smul.addr %s806, 4
        %s808 = scalar_lea.vmem %s16, %s807
        %p809 = pneg %p413
        %p810 = pneg %p410
        %p811 = scmp.lt.s32.totalorder %s36, 1
        %s812 = scalar_select %p811, %s36, 1
        %s813 = scalar_lea.vmem %s17, %s812
        %p814 = pneg %p439
        %p815 = pneg %p436
        %p816 = scmp.lt.s32.totalorder %s36, 1
        %s817 = scalar_select %p816, %s36, 1
        %s818 = scalar_lea.vmem %s18, %s817
        %p819 = pneg %p465
        %p820 = pneg %p462
        %p821 = scmp.lt.s32.totalorder %s36, 1
        %s822 = scalar_select %p821, %s36, 1
        %s823 = scalar_lea.vmem %s19, %s822
        %p824 = pneg %p491
        %p825 = pneg %p488
        %p826 = scmp.lt.s32.totalorder %s36, 1
        %s827 = scalar_select %p826, %s36, 1
        %s828 = smul.addr %s827, 4
        %s829 = smul.addr %s828, 4
        %s830 = scalar_lea.vmem %s20, %s829
        %p831 = pneg %p517
        %p832 = pneg %p514
        %p833 = scmp.lt.s32.totalorder %s36, 1
        %s834 = scalar_select %p833, %s36, 1
        %s835 = scalar_lea.vmem %s21, %s834
        %p836 = pneg %p543
        %p837 = pneg %p540
        %p838 = scmp.lt.s32.totalorder %s36, 1
        %s839 = scalar_select %p838, %s36, 1
        %s840 = smul.addr %s839, 16
        %s841 = smul.addr %s840, 4
        %s842 = scalar_lea.vmem %s22, %s841
        %p843 = pneg %p569
        %p844 = pneg %p566
        %p845 = scmp.lt.s32.totalorder %s36, 1
        %s846 = scalar_select %p845, %s36, 1
        %s847 = scalar_lea.vmem %s23, %s846
        %p848 = pneg %p595
        %p849 = pneg %p592
        %p850 = pneg %p616
        %p851 = pneg %p613
        %p852 = scmp.lt.s32.totalorder %s36, 1
        %s853 = scalar_select %p852, %s36, 1
        %s854 = scalar_lea.vmem %s12, %s853
        %p855 = scmp.lt.s32.totalorder %s36, 1
        %s856 = scalar_select %p855, %s36, 1
        %s857 = scalar_lea.vmem %s13, %s856
        %p858 = scmp.lt.s32.totalorder %s36, 1
        %s859 = scalar_select %p858, %s36, 1
        %s860 = smul.addr %s859, 4
        %s861 = smul.addr %s860, 4
        %s862 = scalar_lea.vmem %s14, %s861
        %p863 = scmp.lt.s32.totalorder %s36, 1
        %s864 = scalar_select %p863, %s36, 1
        %s865 = scalar_lea.vmem %s15, %s864
        %p866 = scmp.lt.s32.totalorder %s36, 1
        %s867 = scalar_select %p866, %s36, 1
        %s868 = smul.addr %s867, 4
        %s869 = smul.addr %s868, 4
        %s870 = scalar_lea.vmem %s16, %s869
        %p871 = scmp.lt.s32.totalorder %s36, 1
        %s872 = scalar_select %p871, %s36, 1
        %s873 = scalar_lea.vmem %s17, %s872
        %p874 = scmp.lt.s32.totalorder %s36, 1
        %s875 = scalar_select %p874, %s36, 1
        %s876 = scalar_lea.vmem %s18, %s875
        %p877 = scmp.lt.s32.totalorder %s36, 1
        %s878 = scalar_select %p877, %s36, 1
        %s879 = scalar_lea.vmem %s19, %s878
        %p880 = scmp.lt.s32.totalorder %s36, 1
        %s881 = scalar_select %p880, %s36, 1
        %s882 = smul.addr %s881, 4
        %s883 = smul.addr %s882, 4
        %s884 = scalar_lea.vmem %s20, %s883
        %p885 = scmp.lt.s32.totalorder %s36, 1
        %s886 = scalar_select %p885, %s36, 1
        %s887 = scalar_lea.vmem %s21, %s886
        %p888 = scmp.lt.s32.totalorder %s36, 1
        %s889 = scalar_select %p888, %s36, 1
        %s890 = smul.addr %s889, 16
        %s891 = smul.addr %s890, 4
        %s892 = scalar_lea.vmem %s22, %s891
        %p893 = scmp.lt.s32.totalorder %s36, 1
        %s894 = scalar_select %p893, %s36, 1
        %s895 = scalar_lea.vmem %s23, %s894
        %p897 = scmp.eq.s32.totalorder %s36, 0
        // Predicated region
        $region117: #{tpu_custom_call.1} parent=115 // pred_check
          %p898 = pneg %p897
        $region118: #{tpu_custom_call.1} parent=115 // pred_check_branch
          %900 = sbr.rel (%p898) target = $region120
        $region119: #{tpu_custom_call.1} parent=115 // pred_region
          %v901 = vld [vmem:[%s0] sm:$0xff]
          %v902 = vld [vmem:[%s0 + $0x8] sm:$0xff]
          %v903 = vld [vmem:[%s0 + $0x10] sm:$0x3]
          %v904 = vld [vmem:[%s0 + $0x18] sm:$0x3]
          %v905 = vld [vmem:[%s1] sm:$0xf]
          %v906 = vld [vmem:[%s1 + $0x4] sm:$0xf]
          %v907 = vld [vmem:[%s1 + $0x8] sm:$0xf]
          %v908 = vld [vmem:[%s1 + $0xc] sm:$0xf]
          %v909 = vld [vmem:[%s1 + $0x10] sm:$0xf]
          %v910 = vld [vmem:[%s1 + $0x14] sm:$0xf]
          %v911 = vld [vmem:[%s1 + $0x18] sm:$0xf]
          %v912 = vld [vmem:[%s1 + $0x1c] sm:$0xf]
          %v913 = vld [vmem:[%s1 + $0x20] sm:$0xf]
          %v914 = vld [vmem:[%s1 + $0x24] sm:$0xf]
          %v915 = vld [vmem:[%s1 + $0x28] sm:$0xf]
          %v916 = vld [vmem:[%s1 + $0x2c] sm:$0xf]
          %v917 = vld [vmem:[%s1 + $0x30] sm:$0xf]
          %v918 = vld [vmem:[%s1 + $0x34] sm:$0xf]
          %v919 = vld [vmem:[%s1 + $0x38] sm:$0xf]
          %v920 = vld [vmem:[%s1 + $0x3c] sm:$0xf]
          %v921 = vld [vmem:[%s1 + $0x40] sm:$0xf]
          %v922 = vld [vmem:[%s1 + $0x44] sm:$0xf]
          %v923 = vld [vmem:[%s1 + $0x48] sm:$0xf]
          %v924 = vld [vmem:[%s1 + $0x4c] sm:$0xf]
          %v925 = vld [vmem:[%s1 + $0x50] sm:$0xf]
          %v926 = vld [vmem:[%s1 + $0x54] sm:$0xf]
          %v927 = vld [vmem:[%s1 + $0x58] sm:$0xf]
          %v928 = vld [vmem:[%s1 + $0x5c] sm:$0xf]
          %v929 = vpack.c.bf16 %v903, %v901
          %v930 = vpack.c.bf16 %v904, %v902
          %v931 = vld [vmem:[%s2] sm:$0xff]
          %v932 = vld [vmem:[%s2 + $0x8] sm:$0x3]
          %v957 = vunpack.c.l.b16 %v905
          %v958 = vunpack.c.l.b16 %v906
          %v959 = vunpack.c.l.b16 %v907
          %v960 = vunpack.c.l.b16 %v908
          %v961 = vunpack.c.l.b16 %v909
          %v962 = vunpack.c.l.b16 %v910
          %v963 = vunpack.c.l.b16 %v911
          %v964 = vunpack.c.l.b16 %v912
          %v965 = vunpack.c.l.b16 %v913
          %v966 = vunpack.c.l.b16 %v914
          %v967 = vunpack.c.l.b16 %v915
          %v968 = vunpack.c.l.b16 %v916
          %v969 = vunpack.c.l.b16 %v917
          %v970 = vunpack.c.l.b16 %v918
          %v971 = vunpack.c.l.b16 %v919
          %v972 = vunpack.c.l.b16 %v920
          %v973 = vunpack.c.l.b16 %v921
          %v974 = vunpack.c.l.b16 %v922
          %v975 = vunpack.c.l.b16 %v923
          %v976 = vunpack.c.l.b16 %v924
          %v977 = vunpack.c.l.b16 %v925
          %v978 = vunpack.c.l.b16 %v926
          %v979 = vunpack.c.l.b16 %v927
          %v980 = vunpack.c.l.b16 %v928
          %v981 = vpack.c.b16 %v958, %v957
          %v982 = vpack.c.b16 %v960, %v959
          %v983 = vpack.c.b16 %v962, %v961
          %v984 = vpack.c.b16 %v964, %v963
          %v985 = vpack.c.b16 %v966, %v965
          %v986 = vpack.c.b16 %v968, %v967
          %v987 = vpack.c.b16 %v970, %v969
          %v988 = vpack.c.b16 %v972, %v971
          %v989 = vpack.c.b16 %v974, %v973
          %v990 = vpack.c.b16 %v976, %v975
          %v991 = vpack.c.b16 %v978, %v977
          %v992 = vpack.c.b16 %v980, %v979
          %vm1005 = vcmask 523264
          %v1007 = vsel %vm1005, %v930, 0
          %1009 = vmatprep.subr.bf16.mxu0 0
          %1010 = vmatpush1.bf16.msra.mxu0 %v981
          %1011 = vmatprep.subr.bf16.mxu0 0
          %1012 = vmatpush1.bf16.msra.mxu0 %v982
          %1013 = vmatprep.subr.bf16.mxu0 0
          %1014 = vmatpush1.bf16.msra.mxu0 %v983
          %1015 = vmatprep.subr.bf16.mxu0 0
          %1016 = vmatpush1.bf16.msra.mxu0 %v984
          %1017 = vmatprep.subr.bf16.mxu0 0
          %1018 = vmatpush1.bf16.msra.mxu0 %v985
          %1019 = vmatprep.subr.bf16.mxu0 0
          %1020 = vmatpush1.bf16.msra.mxu0 %v986
          %1021 = vmatprep.subr.bf16.mxu0 0
          %1022 = vmatpush1.bf16.msra.mxu0 %v987
          %1023 = vmatprep.subr.bf16.mxu0 0
          %1024 = vmatpush1.bf16.msra.mxu0 %v988
          %1025 = vmatprep.subr.bf16.mxu0 0
          %1026 = vmatpush1.bf16.msra.mxu0 %v989
          %1027 = vmatprep.subr.bf16.mxu0 0
          %1028 = vmatpush1.bf16.msra.mxu0 %v990
          %1029 = vmatprep.subr.bf16.mxu0 0
          %1030 = vmatpush1.bf16.msra.mxu0 %v991
          %1031 = vmatprep.subr.bf16.mxu0 0
          %1032 = vmatpush1.bf16.msra.mxu0 %v992
          %1033 = vmatprep.subr.bf16.mxu0 0
          %1034 = vmatpush1.bf16.msra.mxu0 0
          %1035 = vmatprep.subr.bf16.mxu0 0
          %1036 = vmatpush1.bf16.msra.mxu0 0
          %1037 = vmatprep.subr.bf16.mxu0 0
          %1038 = vmatpush1.bf16.msra.mxu0 0
          %1039 = vmatprep.subr.bf16.mxu0 0
          %1040 = vmatpush1.bf16.msra.mxu0 0
          %1041 = vmatprep.mubr.bf16.mxu0 %v1007
          %1042 = vmatmul.mubr.bf16.gmra.mrb[0].mxu0 %v929
          %v1043 = vpop.f32.mrb[0].mxu0
          %v1044 = vadd.f32 %v931, %v1043
          %v1045 = vpop.f32.mrb[0].mxu0
          %v1046 = vpop.f32.mrb[0].mxu0
          %v1047 = vadd.f32 %v932, %v1046
          %v1048 = vpop.f32.mrb[0].mxu0
          %1049 = vdwg.mxu0
          %v1050 = vld [vmem:[%s3] sm:$0x1]
          %v1051 = vld [vmem:[%s4] sm:$0x1]
          %vm1052 = vcmask 261120
          %v1053 = vsel %vm1052, %v1044, 0.0
          %1054 = vadd.xlane.f32.xlu0 %v1053
          %v1055 = vpop.xlane.xlu0 %1054
          %vm1056 = vcmask 254976
          %v1057 = vsel %vm1056, %v1047, 0.0
          %1058 = vadd.xlane.f32.xlu0 %v1057
          %v1059 = vpop.xlane.xlu0 %1058
          %v1060 = vrcp.pop 32.0
          %v1061 = vmul.f32 %v1055, %v1060
          %v1062 = vmul.f32 %v1059, %v1060
          %v1063 = vsub.f32 %v1044, %v1061
          %v1064 = vsub.f32 %v1047, %v1062
          %v1065 = vmul.f32 %v1063, %v1063
          %v1066 = vmul.f32 %v1064, %v1064
          %v1067 = vsel %vm1052, %v1065, 0.0
          %1068 = vadd.xlane.f32.xlu0 %v1067
          %v1069 = vpop.xlane.xlu0 %1068
          %v1070 = vsel %vm1056, %v1066, 0.0
          %1071 = vadd.xlane.f32.xlu0 %v1070
          %v1072 = vpop.xlane.xlu0 %1071
          %v1073 = vmul.f32 %v1069, %v1060
          %v1074 = vmul.f32 %v1072, %v1060
          %v1075 = vadd.f32 %v1073, 1e-05
          %v1076 = vadd.f32 %v1074, 1e-05
          %v1077 = vrsqrt.pop %v1075
          %v1078 = vrsqrt.pop %v1076
          %v1079 = vmul.f32 %v1063, %v1077
          %v1080 = vmul.f32 %v1064, %v1078
          %v1082 = vlaneseq
          %v1083 = vshrl.u32 %v1082, 7
          %v1084 = vsub.s32 0, %v1083
          %v1085 = vrot.slane %v1050, %v1084
          %v1087 = vmul.f32 %v1079, %v1085
          %v1088 = vmul.f32 %v1080, %v1085
          %v1090 = vlaneseq
          %v1091 = vshrl.u32 %v1090, 7
          %v1092 = vsub.s32 0, %v1091
          %v1093 = vrot.slane %v1051, %v1092
          %v1095 = vadd.f32 %v1087, %v1093
          %v1096 = vadd.f32 %v1088, %v1093
          %1097 = vst.msk [vmem:[#allocation2] sm:$0xff] %vm1052, %v1095
          %1098 = vst.msk [vmem:[#allocation2 + $0x8] sm:$0x3] %vm1056, %v1096
        $region120: #{tpu_custom_call.1} parent=115 // pred_fallthru
          _
        %v1099 = vld [vmem:[#allocation2] sm:$0xff]
        %v1100 = vld [vmem:[#allocation2 + $0x8] sm:$0x3]
        %v1101 = vld [vmem:[%s854] sm:$0x1]
        %v1102 = vld [vmem:[%s857] sm:$0x1]
        %vm1103 = vcmask 261120
        %v1104 = vsel %vm1103, %v1099, 0.0
        %1105 = vadd.xlane.f32.xlu0 %v1104
        %v1106 = vpop.xlane.xlu0 %1105
        %vm1107 = vcmask 254976
        %v1108 = vsel %vm1107, %v1100, 0.0
        %1109 = vadd.xlane.f32.xlu0 %v1108
        %v1110 = vpop.xlane.xlu0 %1109
        %v1111 = vrcp.pop 32.0
        %v1112 = vmul.f32 %v1106, %v1111
        %v1113 = vmul.f32 %v1110, %v1111
        %v1114 = vsub.f32 %v1099, %v1112
        %v1115 = vsub.f32 %v1100, %v1113
        %v1116 = vmul.f32 %v1114, %v1114
        %v1117 = vmul.f32 %v1115, %v1115
        %v1118 = vsel %vm1103, %v1116, 0.0
        %1119 = vadd.xlane.f32.xlu0 %v1118
        %v1120 = vpop.xlane.xlu0 %1119
        %v1121 = vsel %vm1107, %v1117, 0.0
        %1122 = vadd.xlane.f32.xlu0 %v1121
        %v1123 = vpop.xlane.xlu0 %1122
        %v1124 = vmul.f32 %v1120, %v1111
        %v1125 = vmul.f32 %v1123, %v1111
        %v1126 = vadd.f32 %v1124, 1e-05
        %v1127 = vadd.f32 %v1125, 1e-05
        %v1128 = vrsqrt.pop %v1126
        %v1129 = vrsqrt.pop %v1127
        %v1130 = vmul.f32 %v1114, %v1128
        %v1131 = vmul.f32 %v1115, %v1129
        %v1133 = vlaneseq
        %v1134 = vshrl.u32 %v1133, 7
        %v1135 = vsub.s32 0, %v1134
        %v1136 = vrot.slane %v1101, %v1135
        %v1138 = vmul.f32 %v1130, %v1136
        %v1139 = vmul.f32 %v1131, %v1136
        %v1141 = vlaneseq
        %v1142 = vshrl.u32 %v1141, 7
        %v1143 = vsub.s32 0, %v1142
        %v1144 = vrot.slane %v1102, %v1143
        %v1146 = vadd.f32 %v1138, %v1144
        %v1147 = vadd.f32 %v1139, %v1144
        %v1148 = vld [vmem:[%s862] sm:$0xf]
        %v1149 = vld [vmem:[%s862 + $0x4] sm:$0xf]
        %v1150 = vld [vmem:[%s862 + $0x8] sm:$0xf]
        %v1151 = vld [vmem:[%s862 + $0xc] sm:$0xf]
        %v1152 = vpack.c.bf16 %v1147, %v1146
        %v1153 = vld [vmem:[%s865] sm:$0x1]
        %v1155 = vlaneseq
        %v1156 = vshrl.u32 %v1155, 7
        %v1157 = vsub.s32 0, %v1156
        %v1158 = vrot.slane %v1153, %v1157
        %v1164 = vunpack.c.l.b16 %v1148
        %v1165 = vunpack.c.l.b16 %v1149
        %v1166 = vunpack.c.l.b16 %v1150
        %v1167 = vunpack.c.l.b16 %v1151
        %v1168 = vpack.c.b16 %v1165, %v1164
        %v1169 = vpack.c.b16 %v1167, %v1166
        %v1173 = vsel %vm1103, %v1152, 0
        %1175 = vmatprep.subr.bf16.mxu0 0
        %1176 = vmatpush1.bf16.msra.mxu0 %v1168
        %1177 = vmatprep.subr.bf16.mxu0 0
        %1178 = vmatpush1.bf16.msra.mxu0 %v1169
        %1179 = vmatprep.subr.bf16.mxu0 0
        %1180 = vmatpush1.bf16.msra.mxu0 0
        %1181 = vmatprep.subr.bf16.mxu0 0
        %1182 = vmatpush1.bf16.msra.mxu0 0
        %1183 = vmatprep.subr.bf16.mxu0 0
        %1184 = vmatpush1.bf16.msra.mxu0 0
        %1185 = vmatprep.subr.bf16.mxu0 0
        %1186 = vmatpush1.bf16.msra.mxu0 0
        %1187 = vmatprep.subr.bf16.mxu0 0
        %1188 = vmatpush1.bf16.msra.mxu0 0
        %1189 = vmatprep.subr.bf16.mxu0 0
        %1190 = vmatpush1.bf16.msra.mxu0 0
        %1191 = vmatprep.subr.bf16.mxu0 0
        %1192 = vmatpush1.bf16.msra.mxu0 0
        %1193 = vmatprep.subr.bf16.mxu0 0
        %1194 = vmatpush1.bf16.msra.mxu0 0
        %1195 = vmatprep.subr.bf16.mxu0 0
        %1196 = vmatpush1.bf16.msra.mxu0 0
        %1197 = vmatprep.subr.bf16.mxu0 0
        %1198 = vmatpush1.bf16.msra.mxu0 0
        %1199 = vmatprep.subr.bf16.mxu0 0
        %1200 = vmatpush1.bf16.msra.mxu0 0
        %1201 = vmatprep.subr.bf16.mxu0 0
        %1202 = vmatpush1.bf16.msra.mxu0 0
        %1203 = vmatprep.subr.bf16.mxu0 0
        %1204 = vmatpush1.bf16.msra.mxu0 0
        %1205 = vmatprep.subr.bf16.mxu0 0
        %1206 = vmatpush1.bf16.msra.mxu0 0
        %1207 = vmatprep.mubr.bf16.mxu0 0
        %1208 = vmatmul.mubr.bf16.gmra.mrb[0].mxu0 %v1173
        %v1209 = vpop.f32.mrb[0].mxu0
        %v1210 = vadd.f32 %v1158, %v1209
        %v1211 = vpop.f32.mrb[0].mxu0
        %v1212 = vpop.f32.mrb[0].mxu0
        %v1213 = vadd.f32 %v1158, %v1212
        %v1214 = vpop.f32.mrb[0].mxu0
        %1215 = vdwg.mxu0
        %v1216 = vld [vmem:[%s5] sm:$0xf]
        %v1217 = vld [vmem:[%s5 + $0x4] sm:$0xf]
        %v1218 = vld [vmem:[%s5 + $0x8] sm:$0xf]
        %v1219 = vld [vmem:[%s5 + $0xc] sm:$0xf]
        %v1220 = vld [vmem:[%s5 + $0x10] sm:$0xf]
        %v1221 = vpack.c.bf16 %v1213, %v1210
        %v1227 = vunpack.c.l.b16 %v1216
        %v1228 = vunpack.c.l.b16 %v1217
        %v1229 = vunpack.c.l.b16 %v1218
        %v1230 = vunpack.c.l.b16 %v1219
        %v1231 = vunpack.c.l.b16 %v1220
        %v1232 = vpack.c.b16 %v1228, %v1227
        %v1233 = vpack.c.b16 %v1230, %v1229
        %v1234 = vpack.c.b16 %v1231, %v1231
        %vm1235 = vcmask 80896
        %v1237 = vsel %vm1235, %v1232, 0
        %v1240 = vsel %vm1235, %v1233, 0
        %v1243 = vsel %vm1235, %v1234, 0
        %vm1245 = vcmask 1044480
        %v1247 = vsel %vm1245, %v1221, 0
        %1249 = vmatprep.subr.bf16.mxu0 0
        %1250 = vmatpush1.bf16.msra.mxu0 %v1247
        %1251 = vmatprep.subr.bf16.mxu0 0
        %1252 = vmatpush1.bf16.msra.mxu0 0
        %1253 = vmatprep.subr.bf16.mxu0 0
        %1254 = vmatpush1.bf16.msra.mxu0 0
        %1255 = vmatprep.subr.bf16.mxu0 0
        %1256 = vmatpush1.bf16.msra.mxu0 0
        %1257 = vmatprep.subr.bf16.mxu0 0
        %1258 = vmatpush1.bf16.msra.mxu0 0
        %1259 = vmatprep.subr.bf16.mxu0 0
        %1260 = vmatpush1.bf16.msra.mxu0 0
        %1261 = vmatprep.subr.bf16.mxu0 0
        %1262 = vmatpush1.bf16.msra.mxu0 0
        %1263 = vmatprep.subr.bf16.mxu0 0
        %1264 = vmatpush1.bf16.msra.mxu0 0
        %1265 = vmatprep.subr.bf16.mxu0 0
        %1266 = vmatpush1.bf16.msra.mxu0 0
        %1267 = vmatprep.subr.bf16.mxu0 0
        %1268 = vmatpush1.bf16.msra.mxu0 0
        %1269 = vmatprep.subr.bf16.mxu0 0
        %1270 = vmatpush1.bf16.msra.mxu0 0
        %1271 = vmatprep.subr.bf16.mxu0 0
        %1272 = vmatpush1.bf16.msra.mxu0 0
        %1273 = vmatprep.subr.bf16.mxu0 0
        %1274 = vmatpush1.bf16.msra.mxu0 0
        %1275 = vmatprep.subr.bf16.mxu0 0
        %1276 = vmatpush1.bf16.msra.mxu0 0
        %1277 = vmatprep.subr.bf16.mxu0 0
        %1278 = vmatpush1.bf16.msra.mxu0 0
        %1279 = vmatprep.subr.bf16.mxu0 0
        %1280 = vmatpush1.bf16.msra.mxu0 0
        %1281 = vmatprep.mubr.bf16.mxu0 0
        %1282 = vmatmul.mubr.bf16.gmra.mrb[0].mxu0 %v1237
        %v1283 = vpop.f32.mrb[0].mxu0
        %v1284 = vadd.f32 0.0, %v1283
        %v1285 = vpop.f32.mrb[0].mxu0
        %v1286 = vpop.f32.mrb[0].mxu0
        %v1287 = vadd.f32 0.0, %v1286
        %v1288 = vpop.f32.mrb[0].mxu0
        %1289 = vmatprep.mubr.bf16.mxu0 0
        %1290 = vmatmul.mubr.bf16.gmra.mrb[0].mxu0 %v1240
        %v1291 = vpop.f32.mrb[0].mxu0
        %v1292 = vadd.f32 0.0, %v1291
        %v1293 = vpop.f32.mrb[0].mxu0
        %v1294 = vpop.f32.mrb[0].mxu0
        %v1295 = vadd.f32 0.0, %v1294
        %v1296 = vpop.f32.mrb[0].mxu0
        %1297 = vmatprep.mubr.bf16.mxu0 0
        %1298 = vmatmul.mubr.bf16.gmra.mrb[0].mxu0 %v1243
        %v1299 = vpop.f32.mrb[0].mxu0
        %v1300 = vadd.f32 0.0, %v1299
        %v1301 = vpop.f32.mrb[0].mxu0
        %v1302 = vpop.f32.mrb[0].mxu0
        %v1303 = vpop.f32.mrb[0].mxu0
        %1304 = vdwg.mxu0
        %v1305 = vld [vmem:[%s7] sm:$0xff]
        %v1306 = vld [vmem:[%s7 + $0x8] sm:$0xff]
        %v1307 = vld [vmem:[%s7 + $0x10] sm:$0xff]
        %v1308 = vld [vmem:[%s7 + $0x18] sm:$0xff]
        %v1309 = vld [vmem:[%s7 + $0x20] sm:$0xff]
        %v1310 = vmul.f32 %v1284, %v1305
        %v1311 = vmul.f32 %v1287, %v1306
        %v1312 = vmul.f32 %v1292, %v1307
        %v1313 = vmul.f32 %v1295, %v1308
        %v1314 = vmul.f32 %v1300, %v1309
        %v1315 = vpack.c.bf16 %v1311, %v1310
        %v1316 = vpack.c.bf16 %v1313, %v1312
        %v1317 = vpack.c.bf16 %v1314, %v1314
        %v1318 = vld [vmem:[%s8] sm:$0xff]
        %v1319 = vld [vmem:[%s8 + $0x8] sm:$0xff]
        %v1320 = vld [vmem:[%s8 + $0x10] sm:$0xff]
        %v1321 = vld [vmem:[%s8 + $0x18] sm:$0xff]
        %v1322 = vld [vmem:[%s8 + $0x20] sm:$0xff]
        %1324 = vrot.lane.b32.xlu0 %v1221, 96
        %v1325 = vpop.permute.xlu0 %1324
        %v1327 = vsel %vm1103, %v1315, 0
        %v1330 = vsel %vm1103, %v1316, 0
        %v1333 = vsel %vm1103, %v1317, 0
        %v1336 = vsel %vm1103, %v1325, 0
        %1338 = vmatprep.subr.bf16.mxu0 0
        %1339 = vmatpush1.bf16.xpose.msra.mxu0 %v1336
        %1340 = vmatprep.subr.bf16.mxu0 0
        %1341 = vmatpush1.bf16.xpose.msra.mxu0 0
        %1342 = vmatprep.subr.bf16.mxu0 0
        %1343 = vmatpush1.bf16.xpose.msra.mxu0 0
        %1344 = vmatprep.subr.bf16.mxu0 0
        %1345 = vmatpush1.bf16.xpose.msra.mxu0 0
        %1346 = vmatprep.subr.bf16.mxu0 0
        %1347 = vmatpush1.bf16.xpose.msra.mxu0 0
        %1348 = vmatprep.subr.bf16.mxu0 0
        %1349 = vmatpush1.bf16.xpose.msra.mxu0 0
        %1350 = vmatprep.subr.bf16.mxu0 0
        %1351 = vmatpush1.bf16.xpose.msra.mxu0 0
        %1352 = vmatprep.subr.bf16.mxu0 0
        %1353 = vmatpush1.bf16.xpose.msra.mxu0 0
        %1354 = vmatprep.subr.bf16.mxu0 0
        %1355 = vmatpush1.bf16.xpose.msra.mxu0 0
        %1356 = vmatprep.subr.bf16.mxu0 0
        %1357 = vmatpush1.bf16.xpose.msra.mxu0 0
        %1358 = vmatprep.subr.bf16.mxu0 0
        %1359 = vmatpush1.bf16.xpose.msra.mxu0 0
        %1360 = vmatprep.subr.bf16.mxu0 0
        %1361 = vmatpush1.bf16.xpose.msra.mxu0 0
        %1362 = vmatprep.subr.bf16.mxu0 0
        %1363 = vmatpush1.bf16.xpose.msra.mxu0 0
        %1364 = vmatprep.subr.bf16.mxu0 0
        %1365 = vmatpush1.bf16.xpose.msra.mxu0 0
        %1366 = vmatprep.subr.bf16.mxu0 0
        %1367 = vmatpush1.bf16.xpose.msra.mxu0 0
        %1368 = vmatprep.subr.bf16.mxu0 0
        %1369 = vmatpush1.bf16.xpose.msra.mxu0 0
        %1370 = vmatprep.mubr.bf16.mxu0 0
        %1371 = vmatmul.mubr.bf16.gmra.mrb[0].mxu0 %v1327
        %v1372 = vpop.f32.mrb[0].mxu0
        %v1373 = vadd.f32 %v1318, %v1372
        %v1374 = vpop.f32.mrb[0].mxu0
        %v1375 = vpop.f32.mrb[0].mxu0
        %v1376 = vadd.f32 %v1319, %v1375
        %v1377 = vpop.f32.mrb[0].mxu0
        %1378 = vmatprep.mubr.bf16.mxu0 0
        %1379 = vmatmul.mubr.bf16.gmra.mrb[0].mxu0 %v1330
        %v1380 = vpop.f32.mrb[0].mxu0
        %v1381 = vadd.f32 %v1320, %v1380
        %v1382 = vpop.f32.mrb[0].mxu0
        %v1383 = vpop.f32.mrb[0].mxu0
        %v1384 = vadd.f32 %v1321, %v1383
        %v1385 = vpop.f32.mrb[0].mxu0
        %1386 = vmatprep.mubr.bf16.mxu0 0
        %1387 = vmatmul.mubr.bf16.gmra.mrb[0].mxu0 %v1333
        %v1388 = vpop.f32.mrb[0].mxu0
        %v1389 = vadd.f32 %v1322, %v1388
        %v1390 = vpop.f32.mrb[0].mxu0
        %v1391 = vpop.f32.mrb[0].mxu0
        %v1392 = vpop.f32.mrb[0].mxu0
        %1393 = vdwg.mxu0
        %v1394 = vsel %vm1235, %v1373, -inf
        %1395 = vmax.xlane.f32.xlu0 %v1394
        %v1396 = vpop.xlane.xlu0 %1395
        %v1397 = vsel %vm1235, %v1376, -inf
        %1398 = vmax.xlane.f32.xlu0 %v1397
        %v1399 = vpop.xlane.xlu0 %1398
        %v1400 = vsel %vm1235, %v1381, -inf
        %1401 = vmax.xlane.f32.xlu0 %v1400
        %v1402 = vpop.xlane.xlu0 %1401
        %v1403 = vsel %vm1235, %v1384, -inf
        %1404 = vmax.xlane.f32.xlu0 %v1403
        %v1405 = vpop.xlane.xlu0 %1404
        %v1406 = vsel %vm1235, %v1389, -inf
        %1407 = vmax.xlane.f32.xlu0 %v1406
        %v1408 = vpop.xlane.xlu0 %1407
        %v1409 = vsub.f32 %v1373, %v1396
        %v1410 = vsub.f32 %v1376, %v1399
        %v1411 = vsub.f32 %v1381, %v1402
        %v1412 = vsub.f32 %v1384, %v1405
        %v1413 = vsub.f32 %v1389, %v1408
        %v1414 = vmul.f32 %v1409, 1.442695
        %v1415 = vpow.pop %v1414
        %v1416 = vmul.f32 %v1410, 1.442695
        %v1417 = vpow.pop %v1416
        %v1418 = vmul.f32 %v1411, 1.442695
        %v1419 = vpow.pop %v1418
        %v1420 = vmul.f32 %v1412, 1.442695
        %v1421 = vpow.pop %v1420
        %v1422 = vmul.f32 %v1413, 1.442695
        %v1423 = vpow.pop %v1422
        %v1424 = vsel %vm1235, %v1415, 0.0
        %1425 = vadd.xlane.f32.xlu0 %v1424
        %v1426 = vpop.xlane.xlu0 %1425
        %v1427 = vsel %vm1235, %v1417, 0.0
        %1428 = vadd.xlane.f32.xlu0 %v1427
        %v1429 = vpop.xlane.xlu0 %1428
        %v1430 = vsel %vm1235, %v1419, 0.0
        %1431 = vadd.xlane.f32.xlu0 %v1430
        %v1432 = vpop.xlane.xlu0 %1431
        %v1433 = vsel %vm1235, %v1421, 0.0
        %1434 = vadd.xlane.f32.xlu0 %v1433
        %v1435 = vpop.xlane.xlu0 %1434
        %v1436 = vsel %vm1235, %v1423, 0.0
        %1437 = vadd.xlane.f32.xlu0 %v1436
        %v1438 = vpop.xlane.xlu0 %1437
        %v1439 = vrcp.pop %v1426
        %v1440 = vrcp.pop %v1429
        %v1441 = vrcp.pop %v1432
        %v1442 = vrcp.pop %v1435
        %v1443 = vrcp.pop %v1438
        %v1444 = vmul.f32 %v1415, %v1439
        %v1445 = vmul.f32 %v1417, %v1440
        %v1446 = vmul.f32 %v1419, %v1441
        %v1447 = vmul.f32 %v1421, %v1442
        %v1448 = vmul.f32 %v1423, %v1443
        %v1449 = vpack.c.bf16 %v1445, %v1444
        %v1450 = vpack.c.bf16 %v1447, %v1446
        %v1451 = vpack.c.bf16 %v1448, %v1448
        %1452 = vrot.lane.b32.xlu0 %v1221, 64
        %v1453 = vpop.permute.xlu0 %1452
        %v1455 = vsel %vm1235, %v1449, 0
        %v1458 = vsel %vm1235, %v1450, 0
        %v1461 = vsel %vm1235, %v1451, 0
        %v1464 = vsel %vm1245, %v1453, 0
        %1466 = vmatprep.subr.bf16.mxu0 0
        %1467 = vmatpush1.bf16.msra.mxu0 %v1464
        %1468 = vmatprep.subr.bf16.mxu0 0
        %1469 = vmatpush1.bf16.msra.mxu0 0
        %1470 = vmatprep.subr.bf16.mxu0 0
        %1471 = vmatpush1.bf16.msra.mxu0 0
        %1472 = vmatprep.subr.bf16.mxu0 0
        %1473 = vmatpush1.bf16.msra.mxu0 0
        %1474 = vmatprep.subr.bf16.mxu0 0
        %1475 = vmatpush1.bf16.msra.mxu0 0
        %1476 = vmatprep.subr.bf16.mxu0 0
        %1477 = vmatpush1.bf16.msra.mxu0 0
        %1478 = vmatprep.subr.bf16.mxu0 0
        %1479 = vmatpush1.bf16.msra.mxu0 0
        %1480 = vmatprep.subr.bf16.mxu0 0
        %1481 = vmatpush1.bf16.msra.mxu0 0
        %1482 = vmatprep.subr.bf16.mxu0 0
        %1483 = vmatpush1.bf16.msra.mxu0 0
        %1484 = vmatprep.subr.bf16.mxu0 0
        %1485 = vmatpush1.bf16.msra.mxu0 0
        %1486 = vmatprep.subr.bf16.mxu0 0
        %1487 = vmatpush1.bf16.msra.mxu0 0
        %1488 = vmatprep.subr.bf16.mxu0 0
        %1489 = vmatpush1.bf16.msra.mxu0 0
        %1490 = vmatprep.subr.bf16.mxu0 0
        %1491 = vmatpush1.bf16.msra.mxu0 0
        %1492 = vmatprep.subr.bf16.mxu0 0
        %1493 = vmatpush1.bf16.msra.mxu0 0
        %1494 = vmatprep.subr.bf16.mxu0 0
        %1495 = vmatpush1.bf16.msra.mxu0 0
        %1496 = vmatprep.subr.bf16.mxu0 0
        %1497 = vmatpush1.bf16.msra.mxu0 0
        %1498 = vmatprep.mubr.bf16.mxu0 0
        %1499 = vmatmul.mubr.bf16.gmra.mrb[0].mxu0 %v1455
        %v1500 = vpop.f32.mrb[0].mxu0
        %v1501 = vadd.f32 0.0, %v1500
        %v1502 = vpop.f32.mrb[0].mxu0
        %v1503 = vpop.f32.mrb[0].mxu0
        %v1504 = vadd.f32 0.0, %v1503
        %v1505 = vpop.f32.mrb[0].mxu0
        %1506 = vmatprep.mubr.bf16.mxu0 0
        %1507 = vmatmul.mubr.bf16.gmra.mrb[0].mxu0 %v1458
        %v1508 = vpop.f32.mrb[0].mxu0
        %v1509 = vadd.f32 0.0, %v1508
        %v1510 = vpop.f32.mrb[0].mxu0
        %v1511 = vpop.f32.mrb[0].mxu0
        %v1512 = vadd.f32 0.0, %v1511
        %v1513 = vpop.f32.mrb[0].mxu0
        %1514 = vmatprep.mubr.bf16.mxu0 0
        %1515 = vmatmul.mubr.bf16.gmra.mrb[0].mxu0 %v1461
        %v1516 = vpop.f32.mrb[0].mxu0
        %v1517 = vadd.f32 0.0, %v1516
        %v1518 = vpop.f32.mrb[0].mxu0
        %v1519 = vpop.f32.mrb[0].mxu0
        %v1520 = vpop.f32.mrb[0].mxu0
        %1521 = vdwg.mxu0
        %v1522 = vld [vmem:[%s6] sm:$0xf]
        %v1523 = vld [vmem:[%s6 + $0x4] sm:$0x1]
        %v1524 = vmul.f32 %v1501, %v1305
        %v1525 = vmul.f32 %v1504, %v1306
        %v1526 = vmul.f32 %v1509, %v1307
        %v1527 = vmul.f32 %v1512, %v1308
        %v1528 = vmul.f32 %v1517, %v1309
        %v1529 = vpack.c.bf16 %v1525, %v1524
        %v1530 = vpack.c.bf16 %v1527, %v1526
        %v1531 = vpack.c.bf16 %v1528, %v1528
        %v1534 = vunpack.c.l.b16 %v1522
        %v1535 = vunpack.c.l.b16 %v1523
        %v1536 = vpack.c.b16 %v1535, %v1534
        %vm1537 = vcmask 326656
        %v1539 = vsel %vm1537, %v1536, 0
        %vm1541 = vcmask 1043456
        %v1543 = vsel %vm1541, %v1531, 0
        %1545 = vmatprep.subr.bf16.mxu0 0
        %1546 = vmatpush1.bf16.msra.mxu0 %v1529
        %1547 = vmatprep.subr.bf16.mxu0 0
        %1548 = vmatpush1.bf16.msra.mxu0 %v1530
        %1549 = vmatprep.subr.bf16.mxu0 0
        %1550 = vmatpush1.bf16.msra.mxu0 %v1543
        %1551 = vmatprep.subr.bf16.mxu0 0
        %1552 = vmatpush1.bf16.msra.mxu0 0
        %1553 = vmatprep.subr.bf16.mxu0 0
        %1554 = vmatpush1.bf16.msra.mxu0 0
        %1555 = vmatprep.subr.bf16.mxu0 0
        %1556 = vmatpush1.bf16.msra.mxu0 0
        %1557 = vmatprep.subr.bf16.mxu0 0
        %1558 = vmatpush1.bf16.msra.mxu0 0
        %1559 = vmatprep.subr.bf16.mxu0 0
        %1560 = vmatpush1.bf16.msra.mxu0 0
        %1561 = vmatprep.subr.bf16.mxu0 0
        %1562 = vmatpush1.bf16.msra.mxu0 0
        %1563 = vmatprep.subr.bf16.mxu0 0
        %1564 = vmatpush1.bf16.msra.mxu0 0
        %1565 = vmatprep.subr.bf16.mxu0 0
        %1566 = vmatpush1.bf16.msra.mxu0 0
        %1567 = vmatprep.subr.bf16.mxu0 0
        %1568 = vmatpush1.bf16.msra.mxu0 0
        %1569 = vmatprep.subr.bf16.mxu0 0
        %1570 = vmatpush1.bf16.msra.mxu0 0
        %1571 = vmatprep.subr.bf16.mxu0 0
        %1572 = vmatpush1.bf16.msra.mxu0 0
        %1573 = vmatprep.subr.bf16.mxu0 0
        %1574 = vmatpush1.bf16.msra.mxu0 0
        %1575 = vmatprep.subr.bf16.mxu0 0
        %1576 = vmatpush1.bf16.msra.mxu0 0
        %1577 = vmatprep.mubr.bf16.mxu0 0
        %1578 = vmatmul.mubr.bf16.gmra.mrb[0].mxu0 %v1539
        %v1579 = vpop.f32.mrb[0].mxu0
        %v1580 = vadd.f32 0.0, %v1579
        %v1581 = vpop.f32.mrb[0].mxu0
        %v1582 = vpop.f32.mrb[0].mxu0
        %v1583 = vadd.f32 0.0, %v1582
        %v1584 = vpop.f32.mrb[0].mxu0
        %1585 = vdwg.mxu0
        %v1586 = vld [vmem:[%s870] sm:$0xf]
        %v1587 = vld [vmem:[%s870 + $0x4] sm:$0xf]
        %v1588 = vld [vmem:[%s870 + $0x8] sm:$0xf]
        %v1589 = vld [vmem:[%s870 + $0xc] sm:$0xf]
        %v1590 = vpack.c.bf16 %v1583, %v1580
        %v1595 = vunpack.c.l.b16 %v1586
        %v1596 = vunpack.c.l.b16 %v1587
        %v1597 = vunpack.c.l.b16 %v1588
        %v1598 = vunpack.c.l.b16 %v1589
        %v1599 = vpack.c.b16 %v1596, %v1595
        %v1600 = vpack.c.b16 %v1598, %v1597
        %v1604 = vsel %vm1103, %v1590, 0
        %1606 = vmatprep.subr.bf16.mxu0 0
        %1607 = vmatpush1.bf16.msra.mxu0 %v1599
        %1608 = vmatprep.subr.bf16.mxu0 0
        %1609 = vmatpush1.bf16.msra.mxu0 %v1600
        %1610 = vmatprep.subr.bf16.mxu0 0
        %1611 = vmatpush1.bf16.msra.mxu0 0
        %1612 = vmatprep.subr.bf16.mxu0 0
        %1613 = vmatpush1.bf16.msra.mxu0 0
        %1614 = vmatprep.subr.bf16.mxu0 0
        %1615 = vmatpush1.bf16.msra.mxu0 0
        %1616 = vmatprep.subr.bf16.mxu0 0
        %1617 = vmatpush1.bf16.msra.mxu0 0
        %1618 = vmatprep.subr.bf16.mxu0 0
        %1619 = vmatpush1.bf16.msra.mxu0 0
        %1620 = vmatprep.subr.bf16.mxu0 0
        %1621 = vmatpush1.bf16.msra.mxu0 0
        %1622 = vmatprep.subr.bf16.mxu0 0
        %1623 = vmatpush1.bf16.msra.mxu0 0
        %1624 = vmatprep.subr.bf16.mxu0 0
        %1625 = vmatpush1.bf16.msra.mxu0 0
        %1626 = vmatprep.subr.bf16.mxu0 0
        %1627 = vmatpush1.bf16.msra.mxu0 0
        %1628 = vmatprep.subr.bf16.mxu0 0
        %1629 = vmatpush1.bf16.msra.mxu0 0
        %1630 = vmatprep.subr.bf16.mxu0 0
        %1631 = vmatpush1.bf16.msra.mxu0 0
        %1632 = vmatprep.subr.bf16.mxu0 0
        %1633 = vmatpush1.bf16.msra.mxu0 0
        %1634 = vmatprep.subr.bf16.mxu0 0
        %1635 = vmatpush1.bf16.msra.mxu0 0
        %1636 = vmatprep.subr.bf16.mxu0 0
        %1637 = vmatpush1.bf16.msra.mxu0 0
        %1638 = vmatprep.mubr.bf16.mxu0 0
        %1639 = vmatmul.mubr.bf16.gmra.mrb[0].mxu0 %v1604
        %v1640 = vpop.f32.mrb[0].mxu0
        %v1641 = vadd.f32 0.0, %v1640
        %v1642 = vpop.f32.mrb[0].mxu0
        %v1643 = vpop.f32.mrb[0].mxu0
        %v1644 = vadd.f32 0.0, %v1643
        %v1645 = vpop.f32.mrb[0].mxu0
        %1646 = vdwg.mxu0
        %v1647 = vadd.f32 %v1099, %v1641
        %v1648 = vadd.f32 %v1100, %v1644
        %v1649 = vld [vmem:[%s873] sm:$0x1]
        %v1651 = vlaneseq
        %v1652 = vshrl.u32 %v1651, 7
        %v1653 = vsub.s32 0, %v1652
        %v1654 = vrot.slane %v1649, %v1653
        %v1656 = vadd.f32 %v1647, %v1654
        %v1657 = vadd.f32 %v1648, %v1654
        %v1658 = vld [vmem:[%s876] sm:$0x1]
        %v1659 = vld [vmem:[%s879] sm:$0x1]
        %v1660 = vsel %vm1103, %v1656, 0.0
        %1661 = vadd.xlane.f32.xlu0 %v1660
        %v1662 = vpop.xlane.xlu0 %1661
        %v1663 = vsel %vm1107, %v1657, 0.0
        %1664 = vadd.xlane.f32.xlu0 %v1663
        %v1665 = vpop.xlane.xlu0 %1664
        %v1666 = vmul.f32 %v1662, %v1111
        %v1667 = vmul.f32 %v1665, %v1111
        %v1668 = vsub.f32 %v1656, %v1666
        %v1669 = vsub.f32 %v1657, %v1667
        %v1670 = vmul.f32 %v1668, %v1668
        %v1671 = vmul.f32 %v1669, %v1669
        %v1672 = vsel %vm1103, %v1670, 0.0
        %1673 = vadd.xlane.f32.xlu0 %v1672
        %v1674 = vpop.xlane.xlu0 %1673
        %v1675 = vsel %vm1107, %v1671, 0.0
        %1676 = vadd.xlane.f32.xlu0 %v1675
        %v1677 = vpop.xlane.xlu0 %1676
        %v1678 = vmul.f32 %v1674, %v1111
        %v1679 = vmul.f32 %v1677, %v1111
        %v1680 = vadd.f32 %v1678, 1e-05
        %v1681 = vadd.f32 %v1679, 1e-05
        %v1682 = vrsqrt.pop %v1680
        %v1683 = vrsqrt.pop %v1681
        %v1684 = vmul.f32 %v1668, %v1682
        %v1685 = vmul.f32 %v1669, %v1683
        %v1687 = vlaneseq
        %v1688 = vshrl.u32 %v1687, 7
        %v1689 = vsub.s32 0, %v1688
        %v1690 = vrot.slane %v1658, %v1689
        %v1692 = vmul.f32 %v1684, %v1690
        %v1693 = vmul.f32 %v1685, %v1690
        %v1695 = vlaneseq
        %v1696 = vshrl.u32 %v1695, 7
        %v1697 = vsub.s32 0, %v1696
        %v1698 = vrot.slane %v1659, %v1697
        %v1700 = vadd.f32 %v1692, %v1698
        %v1701 = vadd.f32 %v1693, %v1698
        %v1702 = vld [vmem:[%s884] sm:$0xf]
        %v1703 = vld [vmem:[%s884 + $0x4] sm:$0xf]
        %v1704 = vld [vmem:[%s884 + $0x8] sm:$0xf]
        %v1705 = vld [vmem:[%s884 + $0xc] sm:$0xf]
        %v1706 = vpack.c.bf16 %v1701, %v1700
        %v1707 = vld [vmem:[%s887] sm:$0x1]
        %v1709 = vlaneseq
        %v1710 = vshrl.u32 %v1709, 7
        %v1711 = vsub.s32 0, %v1710
        %v1712 = vrot.slane %v1707, %v1711
        %v1718 = vunpack.c.l.b16 %v1702
        %v1719 = vunpack.c.l.b16 %v1703
        %v1720 = vunpack.c.l.b16 %v1704
        %v1721 = vunpack.c.l.b16 %v1705
        %v1722 = vpack.c.b16 %v1719, %v1718
        %v1723 = vpack.c.b16 %v1721, %v1720
        %v1727 = vsel %vm1103, %v1706, 0
        %1729 = vmatprep.subr.bf16.mxu0 0
        %1730 = vmatpush1.bf16.msra.mxu0 %v1722
        %1731 = vmatprep.subr.bf16.mxu0 0
        %1732 = vmatpush1.bf16.msra.mxu0 %v1723
        %1733 = vmatprep.subr.bf16.mxu0 0
        %1734 = vmatpush1.bf16.msra.mxu0 0
        %1735 = vmatprep.subr.bf16.mxu0 0
        %1736 = vmatpush1.bf16.msra.mxu0 0
        %1737 = vmatprep.subr.bf16.mxu0 0
        %1738 = vmatpush1.bf16.msra.mxu0 0
        %1739 = vmatprep.subr.bf16.mxu0 0
        %1740 = vmatpush1.bf16.msra.mxu0 0
        %1741 = vmatprep.subr.bf16.mxu0 0
        %1742 = vmatpush1.bf16.msra.mxu0 0
        %1743 = vmatprep.subr.bf16.mxu0 0
        %1744 = vmatpush1.bf16.msra.mxu0 0
        %1745 = vmatprep.subr.bf16.mxu0 0
        %1746 = vmatpush1.bf16.msra.mxu0 0
        %1747 = vmatprep.subr.bf16.mxu0 0
        %1748 = vmatpush1.bf16.msra.mxu0 0
        %1749 = vmatprep.subr.bf16.mxu0 0
        %1750 = vmatpush1.bf16.msra.mxu0 0
        %1751 = vmatprep.subr.bf16.mxu0 0
        %1752 = vmatpush1.bf16.msra.mxu0 0
        %1753 = vmatprep.subr.bf16.mxu0 0
        %1754 = vmatpush1.bf16.msra.mxu0 0
        %1755 = vmatprep.subr.bf16.mxu0 0
        %1756 = vmatpush1.bf16.msra.mxu0 0
        %1757 = vmatprep.subr.bf16.mxu0 0
        %1758 = vmatpush1.bf16.msra.mxu0 0
        %1759 = vmatprep.subr.bf16.mxu0 0
        %1760 = vmatpush1.bf16.msra.mxu0 0
        %1761 = vmatprep.mubr.bf16.mxu0 0
        %1762 = vmatmul.mubr.bf16.gmra.mrb[0].mxu0 %v1727
        %v1763 = vpop.f32.mrb[0].mxu0
        %v1764 = vadd.f32 %v1712, %v1763
        %v1765 = vpop.f32.mrb[0].mxu0
        %v1766 = vpop.f32.mrb[0].mxu0
        %v1767 = vadd.f32 %v1712, %v1766
        %v1768 = vpop.f32.mrb[0].mxu0
        %1769 = vdwg.mxu0
        %v1770 = vmul.f32 %v1764, 1.702
        %v1771 = vmul.f32 %v1767, 1.702
        %v1772 = vxor.u32 %v1770, 2147483648
        %v1773 = vxor.u32 %v1771, 2147483648
        %v1774 = vmul.f32 %v1772, 1.442695
        %v1775 = vpow.pop %v1774
        %v1776 = vmul.f32 %v1773, 1.442695
        %v1777 = vpow.pop %v1776
        %v1778 = vadd.f32 %v1775, 1.0
        %v1779 = vadd.f32 %v1777, 1.0
        %v1780 = vrcp.pop %v1778
        %v1781 = vmul.f32 1.0, %v1780
        %v1782 = vrcp.pop %v1779
        %v1783 = vmul.f32 1.0, %v1782
        %v1784 = vmul.f32 %v1764, %v1781
        %v1785 = vmul.f32 %v1767, %v1783
        %v1786 = vld [vmem:[%s892] sm:$0xf]
        %v1787 = vld [vmem:[%s892 + $0x4] sm:$0xf]
        %v1788 = vld [vmem:[%s892 + $0x8] sm:$0xf]
        %v1789 = vld [vmem:[%s892 + $0xc] sm:$0xf]
        %v1790 = vld [vmem:[%s892 + $0x10] sm:$0xf]
        %v1791 = vld [vmem:[%s892 + $0x14] sm:$0xf]
        %v1792 = vld [vmem:[%s892 + $0x18] sm:$0xf]
        %v1793 = vld [vmem:[%s892 + $0x1c] sm:$0xf]
        %v1794 = vld [vmem:[%s892 + $0x20] sm:$0xf]
        %v1795 = vld [vmem:[%s892 + $0x24] sm:$0xf]
        %v1796 = vld [vmem:[%s892 + $0x28] sm:$0xf]
        %v1797 = vld [vmem:[%s892 + $0x2c] sm:$0xf]
        %v1798 = vld [vmem:[%s892 + $0x30] sm:$0xf]
        %v1799 = vld [vmem:[%s892 + $0x34] sm:$0xf]
        %v1800 = vld [vmem:[%s892 + $0x38] sm:$0xf]
        %v1801 = vld [vmem:[%s892 + $0x3c] sm:$0xf]
        %v1802 = vpack.c.bf16 %v1785, %v1784
        %v1819 = vunpack.c.l.b16 %v1786
        %v1820 = vunpack.c.l.b16 %v1787
        %v1821 = vunpack.c.l.b16 %v1788
        %v1822 = vunpack.c.l.b16 %v1789
        %v1823 = vunpack.c.l.b16 %v1790
        %v1824 = vunpack.c.l.b16 %v1791
        %v1825 = vunpack.c.l.b16 %v1792
        %v1826 = vunpack.c.l.b16 %v1793
        %v1827 = vunpack.c.l.b16 %v1794
        %v1828 = vunpack.c.l.b16 %v1795
        %v1829 = vunpack.c.l.b16 %v1796
        %v1830 = vunpack.c.l.b16 %v1797
        %v1831 = vunpack.c.l.b16 %v1798
        %v1832 = vunpack.c.l.b16 %v1799
        %v1833 = vunpack.c.l.b16 %v1800
        %v1834 = vunpack.c.l.b16 %v1801
        %v1835 = vpack.c.b16 %v1820, %v1819
        %v1836 = vpack.c.b16 %v1822, %v1821
        %v1837 = vpack.c.b16 %v1824, %v1823
        %v1838 = vpack.c.b16 %v1826, %v1825
        %v1839 = vpack.c.b16 %v1828, %v1827
        %v1840 = vpack.c.b16 %v1830, %v1829
        %v1841 = vpack.c.b16 %v1832, %v1831
        %v1842 = vpack.c.b16 %v1834, %v1833
        %1851 = vmatprep.subr.bf16.mxu0 0
        %1852 = vmatpush1.bf16.msra.mxu0 %v1835
        %1853 = vmatprep.subr.bf16.mxu0 0
        %1854 = vmatpush1.bf16.msra.mxu0 %v1836
        %1855 = vmatprep.subr.bf16.mxu0 0
        %1856 = vmatpush1.bf16.msra.mxu0 %v1837
        %1857 = vmatprep.subr.bf16.mxu0 0
        %1858 = vmatpush1.bf16.msra.mxu0 %v1838
        %1859 = vmatprep.subr.bf16.mxu0 0
        %1860 = vmatpush1.bf16.msra.mxu0 %v1839
        %1861 = vmatprep.subr.bf16.mxu0 0
        %1862 = vmatpush1.bf16.msra.mxu0 %v1840
        %1863 = vmatprep.subr.bf16.mxu0 0
        %1864 = vmatpush1.bf16.msra.mxu0 %v1841
        %1865 = vmatprep.subr.bf16.mxu0 0
        %1866 = vmatpush1.bf16.msra.mxu0 %v1842
        %1867 = vmatprep.subr.bf16.mxu0 0
        %1868 = vmatpush1.bf16.msra.mxu0 0
        %1869 = vmatprep.subr.bf16.mxu0 0
        %1870 = vmatpush1.bf16.msra.mxu0 0
        %1871 = vmatprep.subr.bf16.mxu0 0
        %1872 = vmatpush1.bf16.msra.mxu0 0
        %1873 = vmatprep.subr.bf16.mxu0 0
        %1874 = vmatpush1.bf16.msra.mxu0 0
        %1875 = vmatprep.subr.bf16.mxu0 0
        %1876 = vmatpush1.bf16.msra.mxu0 0
        %1877 = vmatprep.subr.bf16.mxu0 0
        %1878 = vmatpush1.bf16.msra.mxu0 0
        %1879 = vmatprep.subr.bf16.mxu0 0
        %1880 = vmatpush1.bf16.msra.mxu0 0
        %1881 = vmatprep.subr.bf16.mxu0 0
        %1882 = vmatpush1.bf16.msra.mxu0 0
        %1883 = vmatprep.mubr.bf16.mxu0 0
        %1884 = vmatmul.mubr.bf16.gmra.mrb[0].mxu0 %v1802
        %v1885 = vpop.f32.mrb[0].mxu0
        %v1886 = vadd.f32 0.0, %v1885
        %v1887 = vpop.f32.mrb[0].mxu0
        %v1888 = vpop.f32.mrb[0].mxu0
        %v1889 = vadd.f32 0.0, %v1888
        %v1890 = vpop.f32.mrb[0].mxu0
        %1891 = vdwg.mxu0
        %v1892 = vadd.f32 %v1656, %v1886
        %v1893 = vadd.f32 %v1657, %v1889
        %v1894 = vld [vmem:[%s895] sm:$0x1]
        %v1896 = vlaneseq
        %v1897 = vshrl.u32 %v1896, 7
        %v1898 = vsub.s32 0, %v1897
        %v1899 = vrot.slane %v1894, %v1898
        %v1901 = vadd.f32 %v1892, %v1899
        %v1902 = vadd.f32 %v1893, %v1899
        %1903 = vst.msk [vmem:[#allocation2] sm:$0xff] %vm1103, %v1901
        %1904 = vst.msk [vmem:[#allocation2 + $0x8] sm:$0x3] %vm1107, %v1902
        %p1905 = scmp.eq.s32.totalorder %s36, 1
        // Predicated region
        $region121: #{tpu_custom_call.1} parent=115 // pred_check
          %p1906 = pneg %p1905
        $region122: #{tpu_custom_call.1} parent=115 // pred_check_branch
          %1908 = sbr.rel (%p1906) target = $region124
        $region123: #{tpu_custom_call.1} parent=115 // pred_region
          %v1909 = vld [vmem:[%s9] sm:$0x1]
          %v1910 = vpack.c.bf16 %v1902, %v1901
          %v1912 = vsel %vm1235, %v1909, 0
          %v1915 = vsel %vm1245, %v1910, 0
          %1917 = vmatprep.subr.bf16.mxu0 0
          %1918 = vmatpush1.bf16.msra.mxu0 %v1915
          %1919 = vmatprep.subr.bf16.mxu0 0
          %1920 = vmatpush1.bf16.msra.mxu0 0
          %1921 = vmatprep.subr.bf16.mxu0 0
          %1922 = vmatpush1.bf16.msra.mxu0 0
          %1923 = vmatprep.subr.bf16.mxu0 0
          %1924 = vmatpush1.bf16.msra.mxu0 0
          %1925 = vmatprep.subr.bf16.mxu0 0
          %1926 = vmatpush1.bf16.msra.mxu0 0
          %1927 = vmatprep.subr.bf16.mxu0 0
          %1928 = vmatpush1.bf16.msra.mxu0 0
          %1929 = vmatprep.subr.bf16.mxu0 0
          %1930 = vmatpush1.bf16.msra.mxu0 0
          %1931 = vmatprep.subr.bf16.mxu0 0
          %1932 = vmatpush1.bf16.msra.mxu0 0
          %1933 = vmatprep.subr.bf16.mxu0 0
          %1934 = vmatpush1.bf16.msra.mxu0 0
          %1935 = vmatprep.subr.bf16.mxu0 0
          %1936 = vmatpush1.bf16.msra.mxu0 0
          %1937 = vmatprep.subr.bf16.mxu0 0
          %1938 = vmatpush1.bf16.msra.mxu0 0
          %1939 = vmatprep.subr.bf16.mxu0 0
          %1940 = vmatpush1.bf16.msra.mxu0 0
          %1941 = vmatprep.subr.bf16.mxu0 0
          %1942 = vmatpush1.bf16.msra.mxu0 0
          %1943 = vmatprep.subr.bf16.mxu0 0
          %1944 = vmatpush1.bf16.msra.mxu0 0
          %1945 = vmatprep.subr.bf16.mxu0 0
          %1946 = vmatpush1.bf16.msra.mxu0 0
          %1947 = vmatprep.subr.bf16.mxu0 0
          %1948 = vmatpush1.bf16.msra.mxu0 0
          %1949 = vmatprep.mubr.bf16.mxu0 0
          %1950 = vmatmul.mubr.bf16.gmra.mrb[0].mxu0 %v1912
          %v1951 = vpop.f32.mrb[0].mxu0
          %v1952 = vadd.f32 0.0, %v1951
          %v1953 = vpop.f32.mrb[0].mxu0
          %v1954 = vpop.f32.mrb[0].mxu0
          %v1955 = vpop.f32.mrb[0].mxu0
          %1956 = vdwg.mxu0
          %v1957 = vld [vmem:[%s10] sm:$0xf]
          %v1958 = vld [vmem:[%s10 + $0x4] sm:$0xf]
          %v1959 = vld [vmem:[%s10 + $0x8] sm:$0xf]
          %v1960 = vld [vmem:[%s10 + $0xc] sm:$0xf]
          %v1961 = vpack.c.bf16 %v1952, %v1952
          %v1962 = vld [vmem:[%s11] sm:$0x1]
          %v1964 = vlaneseq
          %v1965 = vshrl.u32 %v1964, 7
          %v1966 = vsub.s32 0, %v1965
          %v1967 = vrot.slane %v1962, %v1966
          %v1973 = vunpack.c.l.b16 %v1957
          %v1974 = vunpack.c.l.b16 %v1958
          %v1975 = vunpack.c.l.b16 %v1959
          %v1976 = vunpack.c.l.b16 %v1960
          %v1977 = vpack.c.b16 %v1974, %v1973
          %v1978 = vpack.c.b16 %v1976, %v1975
          %v1982 = vsel %vm1103, %v1961, 0
          %1984 = vmatprep.subr.bf16.mxu0 0
          %1985 = vmatpush1.bf16.msra.mxu0 %v1977
          %1986 = vmatprep.subr.bf16.mxu0 0
          %1987 = vmatpush1.bf16.msra.mxu0 %v1978
          %1988 = vmatprep.subr.bf16.mxu0 0
          %1989 = vmatpush1.bf16.msra.mxu0 0
          %1990 = vmatprep.subr.bf16.mxu0 0
          %1991 = vmatpush1.bf16.msra.mxu0 0
          %1992 = vmatprep.subr.bf16.mxu0 0
          %1993 = vmatpush1.bf16.msra.mxu0 0
          %1994 = vmatprep.subr.bf16.mxu0 0
          %1995 = vmatpush1.bf16.msra.mxu0 0
          %1996 = vmatprep.subr.bf16.mxu0 0
          %1997 = vmatpush1.bf16.msra.mxu0 0
          %1998 = vmatprep.subr.bf16.mxu0 0
          %1999 = vmatpush1.bf16.msra.mxu0 0
          %2000 = vmatprep.subr.bf16.mxu0 0
          %2001 = vmatpush1.bf16.msra.mxu0 0
          %2002 = vmatprep.subr.bf16.mxu0 0
          %2003 = vmatpush1.bf16.msra.mxu0 0
          %2004 = vmatprep.subr.bf16.mxu0 0
          %2005 = vmatpush1.bf16.msra.mxu0 0
          %2006 = vmatprep.subr.bf16.mxu0 0
          %2007 = vmatpush1.bf16.msra.mxu0 0
          %2008 = vmatprep.subr.bf16.mxu0 0
          %2009 = vmatpush1.bf16.msra.mxu0 0
          %2010 = vmatprep.subr.bf16.mxu0 0
          %2011 = vmatpush1.bf16.msra.mxu0 0
          %2012 = vmatprep.subr.bf16.mxu0 0
          %2013 = vmatpush1.bf16.msra.mxu0 0
          %2014 = vmatprep.subr.bf16.mxu0 0
          %2015 = vmatpush1.bf16.msra.mxu0 0
          %2016 = vmatprep.mubr.bf16.mxu0 0
          %2017 = vmatmul.mubr.bf16.gmra.mrb[0].mxu0 %v1982
          %v2018 = vpop.f32.mrb[0].mxu0
          %v2019 = vadd.f32 %v1967, %v2018
          %v2020 = vpop.f32.mrb[0].mxu0
          %v2021 = vpop.f32.mrb[0].mxu0
          %v2022 = vpop.f32.mrb[0].mxu0
          %2023 = vdwg.mxu0
          %vm2024 = vcmask 9216
          %2025 = vst.msk [vmem:[#allocation3] sm:$0x3] %vm2024, %v2019
        $region124: #{tpu_custom_call.1} parent=115 // pred_fallthru
          _
        // Predicated region
        $region125: #{tpu_custom_call.1} parent=115 // pred_check
          %p2026 = pneg %p613
        $region126: #{tpu_custom_call.1} parent=115 // pred_check_branch
          %2028 = sbr.rel (%p2026) target = $region128
        $region127: #{tpu_custom_call.1} parent=115 // pred_region
          %s2030 = ssub.s32 32, 32
          %2031 = vsyncadd [#allocation4], %s2030
          %s2033 = sshll.u32 [#allocation3], 4
          %s2034 = int_to_ptr.vmem [resolvable:$true] %s2033
          %2036 = dma.vmem_to_hbm [thread:$0]  %s2034, 32, %s24, [#allocation4]
        $region128: #{tpu_custom_call.1} parent=115 // pred_fallthru
          _
        // Predicated region
        $region129: #{tpu_custom_call.1} parent=115 // pred_check
          %p2037 = pneg %p613
        $region130: #{tpu_custom_call.1} parent=115 // pred_check_branch
          %2039 = sbr.rel (%p2037) target = $region132
        $region131: #{tpu_custom_call.1} parent=115 // pred_region
          %2040 = dma.done [#allocation4], 32
        $region132: #{tpu_custom_call.1} parent=115 // pred_fallthru
          _
      $region116: #{tpu_custom_call.1} parent=5 // pred_fallthru
        _
      %p2041 = scmp.le.s32.totalorder 2, %s31
      // Predicated region
      $region133: #{tpu_custom_call.1} parent=5 // pred_check
        %p2042 = pneg %p2041
      $region134: #{tpu_custom_call.1} parent=5 // pred_check_branch
        %2044 = sbr.rel (%p2042) target = $region136
      $region135: #{tpu_custom_call.1} parent=5 // pred_region
        %s2045 = ssub.s32 %s31, 2
      $region136: #{tpu_custom_call.1} parent=5 // pred_fallthru
        _
    $region6: #{tpu_custom_call.1} parent=1 // loop_footer
      %s35 = sadd.s32 1, %s31
    $region7: #{tpu_custom_call.1} parent=1 // loop_footer_branch
      %30 = sbr.rel target = $region3
    $region8: #{tpu_custom_call.1} parent=1 // loop_exit
      _
    %2046 = vsyncpa [#allocation4], 1
    %s2047 = scalar_lea.sflag [#allocation4], 1
    %2048 = vsyncpa %s2047, 1

</llo_original>
